<compile_context>
chip_gen: v7x
topology: tpu7x:2x2x1
jax: 0.10.0
libtpu: 0.0.40
codegen_flags: <defaults>
</compile_context>

<pallas_src>
import functools

import jax
import jax.numpy as jnp
from jax import lax
from jax.experimental import pallas as pl
from jax.experimental.pallas import tpu as pltpu

_LANE = 128
_TK = 128  # dataset-axis tile (reduction axis); 128 on every TPU generation


def _round_up(x, m):
    return (x + m - 1) // m * m


def _pick_tm(m_padded, batch):
    # Largest lane-dense query tile; keep at least 2 parallel grid blocks so a
    # v7x megacore can shard (b, m) across both TensorCores.
    for c in (1024, 512, 256, 128):
        if m_padded % c == 0 and (batch * (m_padded // c) >= 2 or c == 128):
            return c
    return 128


def _vpu_has_bf16():
    # bf16 VALU exists on v6e/v7x; v5e (and older) emulate it -> keep f32 there.
    try:
        kind = jax.devices()[0].device_kind.lower()
    except Exception:
        return False
    return ("v6" in kind) or ("v7" in kind)


def _query_depth_point_kernel(z1_ref, z2_ref, idx_ref, cnt_ref,
                              tri_ref, run_ref, ss_ref, min_ref,
                              *, dis_z, nsample, ns_rows, cmp_bf16):
    # z1_ref : (tk, 1)      f32  dataset z for this k-block (sublanes)
    # z2_ref : (1, tm)      f32  query z for this m-block (lanes)
    # idx_ref: (ns_rows, tm) int32 output (transposed; lane-dense)
    # cnt_ref: (1, tm)      int32 output
    # tri_ref: (tk, tk)     bf16 scratch: lower-triangular 0/1 (built at k==0)
    # run_ref: (1, tm)      f32  scratch: hits seen in previous k-blocks
    # ss_ref : (ns_rows, tm) f32 scratch: accumulated searchsorted counts
    # min_ref: (1, 1)       f32  scratch: min hit count over this m-tile
    k = pl.program_id(2)
    nk = pl.num_programs(2)
    tk = z1_ref.shape[0]

    @pl.when(k == 0)
    def _init():
        run_ref[...] = jnp.zeros_like(run_ref)
        ss_ref[...] = jnp.zeros_like(ss_ref)
        min_ref[...] = jnp.zeros_like(min_ref)
        r = lax.broadcasted_iota(jnp.int32, tri_ref.shape, 0)
        c = lax.broadcasted_iota(jnp.int32, tri_ref.shape, 1)
        tri_ref[...] = (r >= c).astype(jnp.bfloat16)

    # Saturation early-exit: once every query in this m-tile already has
    # >= nsample hits, later k-blocks cannot change idx/cnt -> skip the work.
    not_done = min_ref[0, 0] < float(nsample)

    @pl.when(not_done)
    def _step():
        z1 = z1_ref[...]                                        # (tk, 1)
        z2 = z2_ref[...]                                        # (1, tm)

        # 0/1 selection mask in bf16 (exact), queries on lanes.
        mask = (jnp.abs(z2 - z1) < dis_z).astype(jnp.bfloat16)  # (tk, tm)

        # In-block inclusive prefix count via MXU (bf16 operands, f32 acc:
        # exact, products are 0/1 and block sums <= tk = 128).
        cum = jnp.dot(tri_ref[...], mask,
                      preferred_element_type=jnp.float32)       # (tk, tm)
        cum = cum + run_ref[...]                                 # global prefix count

        # Searchsorted: index of the (l+1)-th hit == #{k : cum[k, j] <= l}.
        # Clamp to nsample so the compare dtype only sees small exact integers;
        # bf16 on v6e/v7x doubles VALU throughput on the binding loop.
        cd = jnp.bfloat16 if cmp_bf16 else jnp.float32
        cumc = jnp.minimum(cum, float(nsample)).astype(cd)       # (tk, tm)
        zero_row = jnp.zeros((1, cumc.shape[1]), jnp.float32)
        rows = []
        for l in range(ns_rows):
            if l < nsample:
                le = (cumc <= float(l)).astype(cd)               # (tk, tm)
                rows.append(jnp.sum(le, axis=0, keepdims=True)   # (1, tm), exact
                            .astype(jnp.float32))
            else:
                rows.append(zero_row)                            # padded row
        ss_ref[...] += jnp.concatenate(rows, axis=0)             # (ns_rows, tm)

        # Carry the running hit count (= last row of the global prefix count)
        # and its tile-wide minimum (drives the early exit).
        last = cum[tk - 1:, :]                                   # (1, tm)
        run_ref[...] = last
        min_ref[...] = jnp.min(last, axis=1, keepdims=True)      # (1, 1)

    @pl.when(k == nk - 1)
    def _epilogue():
        total = run_ref[...]                                     # (1, tm) f32, exact ints
        cnt = jnp.minimum(total, float(nsample)).astype(jnp.int32)
        ss = ss_ref[...]                                         # (ns_rows, tm)
        first = ss[0:1, :]                                       # first-hit index
        slot = lax.broadcasted_iota(jnp.int32, ss.shape, 0)
        idx = jnp.where(slot < cnt, ss, first)                   # pad slots with first hit
        idx = jnp.where(total > 0.0, idx, 0.0)                   # no hits -> zeros
        idx_ref[...] = idx.astype(jnp.int32)
        cnt_ref[...] = cnt


def query_depth_point(xyz1, xyz2, dis_z, nsample):
    """JAX/Pallas equivalent of QueryDepthPoint(dis_z, nsample)(xyz1, xyz2).

    xyz1: (B, 3, N) float32   dataset points (channel-first, like PyTorch)
    xyz2: (B, 3, M) float32   query points
    returns: idx (B, M, nsample) int32, pts_cnt (B, M) int32
    (the PyTorch op returns int64 idx; cast with .astype(jnp.int64) if required)
    """
    B, C, N = xyz1.shape
    B2, C2, M = xyz2.shape
    assert C == 3 and C2 == 3 and B == B2
    nsample = int(nsample)
    assert nsample >= 1
    # Indices/counts are carried in f32 inside the kernel: exact only below 2^24.
    assert N < (1 << 24), "query_depth_point: N must be < 2^24"

    tk = _TK
    n_pad = _round_up(N, tk)
    m_pad = _round_up(M, _LANE)
    tm = _pick_tm(m_pad, B)
    ns_rows = _round_up(nsample, 8)   # full-sublane idx/ss rows

    # Only the z channel (index 2) is used.
    z1 = xyz1[:, 2, :].astype(jnp.float32)                       # (B, N)
    z2 = xyz2[:, 2, :].astype(jnp.float32)                       # (B, M)
    if n_pad != N:
        # +inf sentinel: |z2 - inf| is never < dis_z, so padded points never match.
        z1 = jnp.pad(z1, ((0, 0), (0, n_pad - N)), constant_values=jnp.inf)
    if m_pad != M:
        # Edge-replicate so padded query lanes saturate together with real ones.
        z2 = jnp.pad(z2, ((0, 0), (0, m_pad - M)), mode="edge")
    z1 = z1.reshape(B, n_pad, 1)      # dataset z on sublanes
    z2 = z2.reshape(B, 1, m_pad)      # query z on lanes

    kernel = functools.partial(
        _query_depth_point_kernel, dis_z=float(dis_z), nsample=nsample,
        ns_rows=ns_rows, cmp_bf16=_vpu_has_bf16())

    grid = (B, m_pad // tm, n_pad // tk)

    # VMEM budget: double-buffered I/O blocks + scratch + elementwise temporaries.
    est = (2 * tk * _LANE * 4            # z1 blocks (lane padded)
           + 2 * 8 * tm * 4              # z2 blocks (sublane padded)
           + 2 * ns_rows * tm * 4        # idx blocks
           + 2 * 8 * tm * 4              # cnt blocks
           + tk * tk * 2                 # tri scratch
           + (ns_rows + 16) * tm * 4     # run/ss/min scratch + slack
           + 6 * tk * tm * 4)            # mask / cum / compare temporaries
    vmem_limit = int(min(48 * 2 ** 20, max(24 * 2 ** 20, 2 * est)))

    flops = 2.0 * B * m_pad * n_pad * tk + (3.0 * nsample + 6.0) * B * m_pad * n_pad
    bytes_accessed = (B * (m_pad // tm) * n_pad * 4    # z1 re-read per m tile
                      + B * m_pad * 4                  # z2
                      + B * m_pad * ns_rows * 4        # idx
                      + B * m_pad * 4)                 # cnt

    idx_t, cnt = pl.pallas_call(
        kernel,
        out_shape=(
            jax.ShapeDtypeStruct((B, ns_rows, m_pad), jnp.int32),
            jax.ShapeDtypeStruct((B, 1, m_pad), jnp.int32),
        ),
        grid=grid,
        in_specs=[
            pl.BlockSpec((None, tk, 1), lambda b, m, k: (b, k, 0)),
            pl.BlockSpec((None, 1, tm), lambda b, m, k: (b, 0, m)),
        ],
        out_specs=(
            pl.BlockSpec((None, ns_rows, tm), lambda b, m, k: (b, 0, m)),
            pl.BlockSpec((None, 1, tm), lambda b, m, k: (b, 0, m)),
        ),
        scratch_shapes=[
            pltpu.VMEM((tk, tk), jnp.bfloat16),        # tri (built at k==0)
            pltpu.VMEM((1, tm), jnp.float32),          # running hit count
            pltpu.VMEM((ns_rows, tm), jnp.float32),    # searchsorted accumulators
            pltpu.VMEM((1, 1), jnp.float32),           # min hit count (early exit)
        ],
        compiler_params=pltpu.CompilerParams(
            dimension_semantics=("parallel", "parallel", "arbitrary"),
            vmem_limit_bytes=vmem_limit,
        ),
        cost_estimate=pl.CostEstimate(
            flops=int(flops), transcendentals=0,
            bytes_accessed=int(bytes_accessed)),
    )(z1, z2)

    idx = jnp.swapaxes(idx_t[:, :nsample, :M], 1, 2)   # (B, M, nsample) int32
    pts_cnt = cnt[:, 0, :M]                            # (B, M) int32
    return idx, pts_cnt


if __name__ == "__main__":
    import numpy as np

    # Non-multiples of 128 and nsample not a multiple of 8: exercises padding,
    # M-tiling, the k-carry and the saturation early-exit.
    B, N, M = 2, 300, 200
    dis_z, nsample = 0.3, 6

    key = jax.random.PRNGKey(0)
    k1, k2 = jax.random.split(key)
    xyz1 = jax.random.normal(k1, (B, 3, N), dtype=jnp.float32)
    xyz2 = jax.random.normal(k2, (B, 3, M), dtype=jnp.float32)
    # Force one query with no neighbors to exercise the zero-hit path.
    xyz2 = xyz2.at[:, 2, 0].set(100.0)

    idx, pts_cnt = query_depth_point(xyz1, xyz2, dis_z, nsample)
    jax.block_until_ready((idx, pts_cnt))

    # Pure-python reference mirroring the CUDA kernel semantics (f32 arithmetic).
    z1n = np.asarray(xyz1)[:, 2, :].astype(np.float32)
    z2n = np.asarray(xyz2)[:, 2, :].astype(np.float32)
    d32 = np.float32(dis_z)
    ref_idx = np.zeros((B, M, nsample), dtype=np.int32)
    ref_cnt = np.zeros((B, M), dtype=np.int32)
    for b in range(B):
        for j in range(M):
            c = 0
            for kk in range(N):
                if c == nsample:
                    break
                if np.abs(np.float32(z2n[b, j] - z1n[b, kk])) < d32:
                    if c == 0:
                        ref_idx[b, j, :] = kk
                    ref_idx[b, j, c] = kk
                    c += 1
            ref_cnt[b, j] = c

    assert idx.shape == (B, M, nsample) and pts_cnt.shape == (B, M)
    assert idx.dtype == jnp.int32 and pts_cnt.dtype == jnp.int32
    np.testing.assert_array_equal(np.asarray(idx), ref_idx)
    np.testing.assert_array_equal(np.asarray(pts_cnt), ref_cnt)
    print("KERNEL_OK")
</pallas_src>

<mosaic_0001>
module attributes {stable_mosaic.version = 11 : i64} {
  func.func @_query_depth_point_kernel(%arg0: i32, %arg1: i32, %arg2: i32, %arg3: memref<1x128x1xf32, #tpu.memory_space<vmem>>, %arg4: memref<1x1x256xf32, #tpu.memory_space<vmem>>, %arg5: memref<1x8x256xi32, #tpu.memory_space<vmem>>, %arg6: memref<1x1x256xi32, #tpu.memory_space<vmem>>, %arg7: memref<128x128xbf16, #tpu.memory_space<vmem>>, %arg8: memref<1x256xf32, #tpu.memory_space<vmem>>, %arg9: memref<8x256xf32, #tpu.memory_space<vmem>>, %arg10: memref<1x1xf32, #tpu.memory_space<vmem>>) attributes {dimension_semantics = [#tpu.dimension_semantics<parallel>, #tpu.dimension_semantics<parallel>, #tpu.dimension_semantics<arbitrary>], iteration_bounds = array<i64: 2, 1, 3>, scalar_prefetch = 0 : i64, scratch_operands = 4 : i64, tpu.core_type = #tpu.core_type<tc>, window_params = [{transform_indices = @transform_0, window_bounds = array<i64: 1, 128, 1>}, {transform_indices = @transform_1, window_bounds = array<i64: 1, 1, 256>}, {transform_indices = @transform_2, window_bounds = array<i64: 1, 8, 256>}, {transform_indices = @transform_3, window_bounds = array<i64: 1, 1, 256>}]} {
    %c0_i32 = arith.constant 0 : i32
    %0 = arith.cmpi eq, %arg2, %c0_i32 : i32
    %1 = arith.extui %0 : i1 to i32
    %c0_i32_0 = arith.constant 0 : i32
    %2 = arith.cmpi ne, %1, %c0_i32_0 : i32
    scf.if %2 {
      %cst_4 = arith.constant 0.000000e+00 : f32
      %11 = vector.broadcast %cst_4 : f32 to vector<1x256xf32>
      %c0_5 = arith.constant 0 : index
      %c0_6 = arith.constant 0 : index
      %12 = vector.load %arg8[%c0_5, %c0_6] : memref<1x256xf32, #tpu.memory_space<vmem>>, vector<1x256xf32>
      tpu.vector_store %arg8[%c0_5, %c0_6], %11 {strides = array<i32>} : memref<1x256xf32, #tpu.memory_space<vmem>>, vector<1x256xf32>,
      %cst_7 = arith.constant 0.000000e+00 : f32
      %13 = vector.broadcast %cst_7 : f32 to vector<8x256xf32>
      %c0_8 = arith.constant 0 : index
      %c0_9 = arith.constant 0 : index
      %14 = vector.load %arg9[%c0_8, %c0_9] : memref<8x256xf32, #tpu.memory_space<vmem>>, vector<8x256xf32>
      tpu.vector_store %arg9[%c0_8, %c0_9], %13 {strides = array<i32>} : memref<8x256xf32, #tpu.memory_space<vmem>>, vector<8x256xf32>,
      %cst_10 = arith.constant 0.000000e+00 : f32
      %15 = vector.broadcast %cst_10 : f32 to vector<1x1xf32>
      %c0_11 = arith.constant 0 : index
      %c0_12 = arith.constant 0 : index
      %16 = vector.load %arg10[%c0_11, %c0_12] : memref<1x1xf32, #tpu.memory_space<vmem>>, vector<1x1xf32>
      tpu.vector_store %arg10[%c0_11, %c0_12], %15 {strides = array<i32>} : memref<1x1xf32, #tpu.memory_space<vmem>>, vector<1x1xf32>,
      %17 = tpu.iota {dimensions = array<i32: 0>} : vector<128x128xi32>
      %18 = tpu.iota {dimensions = array<i32: 1>} : vector<128x128xi32>
      %19 = arith.cmpi sge, %17, %18 : vector<128x128xi32>
      %20 = arith.extui %19 : vector<128x128xi1> to vector<128x128xi32>
      %21 = arith.sitofp %20 : vector<128x128xi32> to vector<128x128xf32>
      %22 = arith.truncf %21 : vector<128x128xf32> to vector<128x128xbf16>
      %c0_13 = arith.constant 0 : index
      %c0_14 = arith.constant 0 : index
      %23 = vector.load %arg7[%c0_13, %c0_14] : memref<128x128xbf16, #tpu.memory_space<vmem>>, vector<128x128xbf16>
      tpu.vector_store %arg7[%c0_13, %c0_14], %22 {strides = array<i32>} : memref<128x128xbf16, #tpu.memory_space<vmem>>, vector<128x128xbf16>,
    } else {
    }
    %c0 = arith.constant 0 : index
    %c0_1 = arith.constant 0 : index
    %3 = vector.load %arg10[%c0, %c0_1] : memref<1x1xf32, #tpu.memory_space<vmem>>, vector<1x1xf32>
    %4 = vector.extract %3[0, 0] : f32 from vector<1x1xf32>
    %cst = arith.constant 6.000000e+00 : f32
    %5 = arith.cmpf olt, %4, %cst : f32
    %6 = arith.extui %5 : i1 to i32
    %c0_i32_2 = arith.constant 0 : i32
    %7 = arith.cmpi ne, %6, %c0_i32_2 : i32
    scf.if %7 {
      %c0_4 = arith.constant 0 : index
      %c0_5 = arith.constant 0 : index
      %c0_6 = arith.constant 0 : index
      %11 = vector.load %arg3[%c0_4, %c0_5, %c0_6] : memref<1x128x1xf32, #tpu.memory_space<vmem>>, vector<1x128x1xf32>
      %12 = vector.shape_cast %11 : vector<1x128x1xf32> to vector<128x1xf32>
      %c0_7 = arith.constant 0 : index
      %c0_8 = arith.constant 0 : index
      %c0_9 = arith.constant 0 : index
      %13 = vector.load %arg4[%c0_7, %c0_8, %c0_9] : memref<1x1x256xf32, #tpu.memory_space<vmem>>, vector<1x1x256xf32>
      %14 = vector.shape_cast %13 : vector<1x1x256xf32> to vector<1x256xf32>
      %15 = vector.broadcast %14 : vector<1x256xf32> to vector<128x256xf32>
      %16 = vector.broadcast %12 : vector<128x1xf32> to vector<128x256xf32>
      %17 = arith.subf %15, %16 : vector<128x256xf32>
      %18 = math.absf %17 : vector<128x256xf32>
      %cst_10 = arith.constant 3.000000e-01 : f32
      %19 = vector.broadcast %cst_10 : f32 to vector<128x256xf32>
      %20 = arith.cmpf olt, %18, %19 : vector<128x256xf32>
      %21 = arith.extui %20 : vector<128x256xi1> to vector<128x256xi32>
      %22 = arith.sitofp %21 : vector<128x256xi32> to vector<128x256xf32>
      %23 = arith.truncf %22 : vector<128x256xf32> to vector<128x256xbf16>
      %c0_11 = arith.constant 0 : index
      %c0_12 = arith.constant 0 : index
      %24 = vector.load %arg7[%c0_11, %c0_12] : memref<128x128xbf16, #tpu.memory_space<vmem>>, vector<128x128xbf16>
      %cst_13 = arith.constant dense<0.000000e+00> : vector<128x256xf32>
      %25 = tpu.matmul %24, %23, %cst_13 {dimension_numbers = #tpu.dot_dimension_numbers<[1], [0], [0], [1], [0, 0, 1, 1], [], []>} : vector<128x128xbf16>, vector<128x256xbf16>, vector<128x256xf32> -> vector<128x256xf32>
      %c0_14 = arith.constant 0 : index
      %c0_15 = arith.constant 0 : index
      %26 = vector.load %arg8[%c0_14, %c0_15] : memref<1x256xf32, #tpu.memory_space<vmem>>, vector<1x256xf32>
      %27 = vector.broadcast %26 : vector<1x256xf32> to vector<128x256xf32>
      %28 = arith.addf %25, %27 : vector<128x256xf32>
      %cst_16 = arith.constant 6.000000e+00 : f32
      %29 = vector.broadcast %cst_16 : f32 to vector<128x256xf32>
      %30 = arith.minimumf %28, %29 : vector<128x256xf32>
      %cst_17 = arith.constant 0.000000e+00 : f32
      %31 = vector.broadcast %cst_17 : f32 to vector<1x256xf32>
      %cst_18 = arith.constant 0.000000e+00 : f32
      %32 = vector.broadcast %cst_18 : f32 to vector<128x256xf32>
      %33 = arith.cmpf ole, %30, %32 : vector<128x256xf32>
      %34 = arith.extui %33 : vector<128x256xi1> to vector<128x256xi32>
      %35 = arith.sitofp %34 : vector<128x256xi32> to vector<128x256xf32>
      %cst_19 = arith.constant dense<0.000000e+00> : vector<256xf32>
      %36 = vector.multi_reduction <add>, %35, %cst_19 [0] : vector<128x256xf32> to vector<256xf32>
      %37 = vector.shape_cast %36 : vector<256xf32> to vector<1x256xf32>
      %cst_20 = arith.constant 1.000000e+00 : f32
      %38 = vector.broadcast %cst_20 : f32 to vector<128x256xf32>
      %39 = arith.cmpf ole, %30, %38 : vector<128x256xf32>
      %40 = arith.extui %39 : vector<128x256xi1> to vector<128x256xi32>
      %41 = arith.sitofp %40 : vector<128x256xi32> to vector<128x256xf32>
      %cst_21 = arith.constant dense<0.000000e+00> : vector<256xf32>
      %42 = vector.multi_reduction <add>, %41, %cst_21 [0] : vector<128x256xf32> to vector<256xf32>
      %43 = vector.shape_cast %42 : vector<256xf32> to vector<1x256xf32>
      %cst_22 = arith.constant 2.000000e+00 : f32
      %44 = vector.broadcast %cst_22 : f32 to vector<128x256xf32>
      %45 = arith.cmpf ole, %30, %44 : vector<128x256xf32>
      %46 = arith.extui %45 : vector<128x256xi1> to vector<128x256xi32>
      %47 = arith.sitofp %46 : vector<128x256xi32> to vector<128x256xf32>
      %cst_23 = arith.constant dense<0.000000e+00> : vector<256xf32>
      %48 = vector.multi_reduction <add>, %47, %cst_23 [0] : vector<128x256xf32> to vector<256xf32>
      %49 = vector.shape_cast %48 : vector<256xf32> to vector<1x256xf32>
      %cst_24 = arith.constant 3.000000e+00 : f32
      %50 = vector.broadcast %cst_24 : f32 to vector<128x256xf32>
      %51 = arith.cmpf ole, %30, %50 : vector<128x256xf32>
      %52 = arith.extui %51 : vector<128x256xi1> to vector<128x256xi32>
      %53 = arith.sitofp %52 : vector<128x256xi32> to vector<128x256xf32>
      %cst_25 = arith.constant dense<0.000000e+00> : vector<256xf32>
      %54 = vector.multi_reduction <add>, %53, %cst_25 [0] : vector<128x256xf32> to vector<256xf32>
      %55 = vector.shape_cast %54 : vector<256xf32> to vector<1x256xf32>
      %cst_26 = arith.constant 4.000000e+00 : f32
      %56 = vector.broadcast %cst_26 : f32 to vector<128x256xf32>
      %57 = arith.cmpf ole, %30, %56 : vector<128x256xf32>
      %58 = arith.extui %57 : vector<128x256xi1> to vector<128x256xi32>
      %59 = arith.sitofp %58 : vector<128x256xi32> to vector<128x256xf32>
      %cst_27 = arith.constant dense<0.000000e+00> : vector<256xf32>
      %60 = vector.multi_reduction <add>, %59, %cst_27 [0] : vector<128x256xf32> to vector<256xf32>
      %61 = vector.shape_cast %60 : vector<256xf32> to vector<1x256xf32>
      %cst_28 = arith.constant 5.000000e+00 : f32
      %62 = vector.broadcast %cst_28 : f32 to vector<128x256xf32>
      %63 = arith.cmpf ole, %30, %62 : vector<128x256xf32>
      %64 = arith.extui %63 : vector<128x256xi1> to vector<128x256xi32>
      %65 = arith.sitofp %64 : vector<128x256xi32> to vector<128x256xf32>
      %cst_29 = arith.constant dense<0.000000e+00> : vector<256xf32>
      %66 = vector.multi_reduction <add>, %65, %cst_29 [0] : vector<128x256xf32> to vector<256xf32>
      %67 = vector.shape_cast %66 : vector<256xf32> to vector<1x256xf32>
      %c0_30 = arith.constant 0 : index
      %c0_31 = arith.constant 0 : index
      %68 = vector.load %arg9[%c0_30, %c0_31] : memref<8x256xf32, #tpu.memory_space<vmem>>, vector<8x256xf32>
      %69 = tpu.concatenate %37, %43, %49, %55, %61, %67, %31, %31 in 0 : vector<1x256xf32>, vector<1x256xf32>, vector<1x256xf32>, vector<1x256xf32>, vector<1x256xf32>, vector<1x256xf32>, vector<1x256xf32>, vector<1x256xf32> -> vector<8x256xf32>
      %70 = arith.addf %68, %69 : vector<8x256xf32>
      %c0_32 = arith.constant 0 : index
      %c0_33 = arith.constant 0 : index
      %71 = vector.load %arg9[%c0_32, %c0_33] : memref<8x256xf32, #tpu.memory_space<vmem>>, vector<8x256xf32>
      tpu.vector_store %arg9[%c0_32, %c0_33], %70 {strides = array<i32>} : memref<8x256xf32, #tpu.memory_space<vmem>>, vector<8x256xf32>,
      %72 = vector.extract_strided_slice %28 {offsets = [127, 0], sizes = [1, 256], strides = [1, 1]} : vector<128x256xf32> to vector<1x256xf32>
      %c0_34 = arith.constant 0 : index
      %c0_35 = arith.constant 0 : index
      %73 = vector.load %arg8[%c0_34, %c0_35] : memref<1x256xf32, #tpu.memory_space<vmem>>, vector<1x256xf32>
      tpu.vector_store %arg8[%c0_34, %c0_35], %72 {strides = array<i32>} : memref<1x256xf32, #tpu.memory_space<vmem>>, vector<1x256xf32>,
      %cst_36 = arith.constant dense<0x7F800000> : vector<1xf32>
      %74 = vector.multi_reduction <minimumf>, %72, %cst_36 [1] : vector<1x256xf32> to vector<1xf32>
      %75 = vector.shape_cast %74 : vector<1xf32> to vector<1x1xf32>
      %c0_37 = arith.constant 0 : index
      %c0_38 = arith.constant 0 : index
      %76 = vector.load %arg10[%c0_37, %c0_38] : memref<1x1xf32, #tpu.memory_space<vmem>>, vector<1x1xf32>
      tpu.vector_store %arg10[%c0_37, %c0_38], %75 {strides = array<i32>} : memref<1x1xf32, #tpu.memory_space<vmem>>, vector<1x1xf32>,
    } else {
    }
    %c2_i32 = arith.constant 2 : i32
    %8 = arith.cmpi eq, %arg2, %c2_i32 : i32
    %9 = arith.extui %8 : i1 to i32
    %c0_i32_3 = arith.constant 0 : i32
    %10 = arith.cmpi ne, %9, %c0_i32_3 : i32
    scf.if %10 {
      %c0_4 = arith.constant 0 : index
      %c0_5 = arith.constant 0 : index
      %11 = vector.load %arg8[%c0_4, %c0_5] : memref<1x256xf32, #tpu.memory_space<vmem>>, vector<1x256xf32>
      %cst_6 = arith.constant 6.000000e+00 : f32
      %12 = vector.broadcast %cst_6 : f32 to vector<1x256xf32>
      %13 = arith.minimumf %11, %12 : vector<1x256xf32>
      %14 = arith.fptosi %13 : vector<1x256xf32> to vector<1x256xi32>
      %c0_7 = arith.constant 0 : index
      %c0_8 = arith.constant 0 : index
      %15 = vector.load %arg9[%c0_7, %c0_8] : memref<8x256xf32, #tpu.memory_space<vmem>>, vector<8x256xf32>
      %16 = vector.extract_strided_slice %15 {offsets = [0, 0], sizes = [1, 256], strides = [1, 1]} : vector<8x256xf32> to vector<1x256xf32>
      %17 = tpu.iota {dimensions = array<i32: 0>} : vector<8x256xi32>
      %18 = vector.broadcast %14 : vector<1x256xi32> to vector<8x256xi32>
      %19 = arith.cmpi slt, %17, %18 : vector<8x256xi32>
      %20 = vector.shape_cast %16 : vector<1x256xf32> to vector<1x256xf32>
      %21 = vector.broadcast %20 : vector<1x256xf32> to vector<8x256xf32>
      %22 = arith.select %19, %15, %21 : vector<8x256xi1>, vector<8x256xf32>
      %cst_9 = arith.constant 0.000000e+00 : f32
      %23 = vector.broadcast %cst_9 : f32 to vector<1x256xf32>
      %24 = arith.cmpf ogt, %11, %23 : vector<1x256xf32>
      %cst_10 = arith.constant 0.000000e+00 : f32
      %25 = vector.shape_cast %24 : vector<1x256xi1> to vector<1x256xi1>
      %26 = vector.broadcast %25 : vector<1x256xi1> to vector<8x256xi1>
      %27 = vector.broadcast %cst_10 : f32 to vector<8x256xf32>
      %28 = arith.select %26, %22, %27 : vector<8x256xi1>, vector<8x256xf32>
      %29 = arith.fptosi %28 : vector<8x256xf32> to vector<8x256xi32>
      %c0_11 = arith.constant 0 : index
      %c0_12 = arith.constant 0 : index
      %c0_13 = arith.constant 0 : index
      %30 = vector.load %arg5[%c0_11, %c0_12, %c0_13] : memref<1x8x256xi32, #tpu.memory_space<vmem>>, vector<1x8x256xi32>
      %31 = vector.shape_cast %30 : vector<1x8x256xi32> to vector<8x256xi32>
      %32 = vector.shape_cast %29 : vector<8x256xi32> to vector<1x8x256xi32>
      tpu.vector_store %arg5[%c0_11, %c0_12, %c0_13], %32 {strides = array<i32>} : memref<1x8x256xi32, #tpu.memory_space<vmem>>, vector<1x8x256xi32>,
      %c0_14 = arith.constant 0 : index
      %c0_15 = arith.constant 0 : index
      %c0_16 = arith.constant 0 : index
      %33 = vector.load %arg6[%c0_14, %c0_15, %c0_16] : memref<1x1x256xi32, #tpu.memory_space<vmem>>, vector<1x1x256xi32>
      %34 = vector.shape_cast %33 : vector<1x1x256xi32> to vector<1x256xi32>
      %35 = vector.shape_cast %14 : vector<1x256xi32> to vector<1x1x256xi32>
      tpu.vector_store %arg6[%c0_14, %c0_15, %c0_16], %35 {strides = array<i32>} : memref<1x1x256xi32, #tpu.memory_space<vmem>>, vector<1x1x256xi32>,
    } else {
    }
    return
  }
  func.func @transform_0(%arg0: i32, %arg1: i32, %arg2: i32) -> (i32, i32, i32) {
    %c0_i32 = arith.constant 0 : i32
    %c0_i32_0 = arith.constant 0 : i32
    return %arg0, %arg2, %c0_i32 : i32, i32, i32
  }
  func.func @transform_1(%arg0: i32, %arg1: i32, %arg2: i32) -> (i32, i32, i32) {
    %c0_i32 = arith.constant 0 : i32
    %c0_i32_0 = arith.constant 0 : i32
    return %arg0, %c0_i32, %arg1 : i32, i32, i32
  }
  func.func @transform_2(%arg0: i32, %arg1: i32, %arg2: i32) -> (i32, i32, i32) {
    %c0_i32 = arith.constant 0 : i32
    %c0_i32_0 = arith.constant 0 : i32
    return %arg0, %c0_i32, %arg1 : i32, i32, i32
  }
  func.func @transform_3(%arg0: i32, %arg1: i32, %arg2: i32) -> (i32, i32, i32) {
    %c0_i32 = arith.constant 0 : i32
    %c0_i32_0 = arith.constant 0 : i32
    return %arg0, %c0_i32, %arg1 : i32, i32, i32
  }
}

</mosaic_0001>

<llo_original>
// kernel: tpu_custom_call.1
$region0: #{tpu_custom_call.1}
  #allocation0 [shape = 'u32[]', space=smem, size = 0x4, offset = 0x4, fixed_abs, tag = 'smem constant byte address 0x4 - core index']
  #allocation1 [shape = 'u32[144,128]{1,0:T(1,128)}', space=vmem, size = 0x12000, scoped, tag = 'internal scratch']
  #allocation2 [shape = 'bf16[128,128]{1,0:T(16,128)(2,1)}', space=vmem, size = 0x8000, scoped, tag = 'scratch operand']
  #allocation3 [shape = 'f32[1,256]{1,0:T(1,128)}', space=vmem, size = 0x400, scoped, tag = 'scratch operand']
  #allocation4 [shape = 'f32[8,256]{1,0:T(8,128)}', space=vmem, size = 0x2000, scoped, tag = 'scratch operand']
  #allocation5 [shape = 'f32[1,1]{1,0:T(1,128)}', space=vmem, size = 0x200, scoped, tag = 'scratch operand']
  %s0 = inlined_call_operand.vmem [shape: f32[2,384,1], index: 0, kind: input, shape index: {}]
  %s1 = inlined_call_operand.vmem [shape: f32[2,1,256], index: 1, kind: input, shape index: {}]
  %s2 = inlined_call_operand.hbm [shape: s32[2,8,256], index: 2, kind: output, shape index: {0}]
  %s3 = inlined_call_operand.hbm [shape: s32[2,1,256], index: 3, kind: output, shape index: {1}]
  %4 = xla_tuple %s2, %s3
  %s5 = sld [smem:[#allocation0]]
  $region61: #{tpu_custom_call.1} parent=0
    _
  %s7 = ssub.s32 1, %s5
  %s8 = scalar_select 0, %s7, %s5
  $region1: #{tpu_custom_call.1} parent=0
    #allocation6 [shape = 'u8[16384]{0}', space=vmem, size = 0x4000, scoped, tag = 'output window, operand 0']
    #allocation7 [shape = 's32[2]{0}', space=sflag, size = 0x8, scoped, tag = 'scoped memory for tpu_custom_call.1']
    #allocation8 [shape = 'u8[2048]{0}', space=vmem, size = 0x800, scoped, tag = 'output window, operand 1']
    #allocation9 [shape = 's32[2]{0}', space=sflag, size = 0x8, scoped, tag = 'scoped memory for tpu_custom_call.1']
    %9 = vsyncpa [#allocation7], 0
    %s10 = scalar_lea.sflag [#allocation7], 1
    %11 = vsyncpa %s10, 0
    %12 = vsyncpa [#allocation9], 0
    %s13 = scalar_lea.sflag [#allocation9], 1
    %14 = vsyncpa %s13, 0
    loop: start=0, step=1, limit=8
    $region2: #{tpu_custom_call.1} parent=1 // loop_pre_header
      _
    $region3: #{tpu_custom_call.1} parent=1 // loop_header
      %s16 = sphi 0, %s20
      %p17 = scmp.ge.s32.totalorder %s16, 8
      %s23 = sphi 0, %s42
      %s24 = sphi 0, %s38
      %s25 = sphi 0, %s34
      %s26 = sphi 0, %s23
      %s27 = sphi 0, %s24
      %s28 = sphi 0, %s25
      %s29 = sphi 0, %s26
      %s30 = sphi 0, %s27
      %s31 = sphi 0, %s28
      %s47 = sphi 0, %s49
      %s50 = sphi 0, %s47
      %s51 = sphi 0, %s50
      %s67 = sphi 0, %s51
      %s75 = sphi 0, %s77
      %s78 = sphi 0, %s75
      %s79 = sphi 0, %s78
      %s95 = sphi 0, %s79
      %s103 = sphi 0, %s105
      %s106 = sphi 0, %s103
      %s107 = sphi 0, %s106
      %s123 = sphi 0, %s107
      %s131 = sphi 0, %s133
      %s134 = sphi 0, %s131
      %s135 = sphi 0, %s134
      %s151 = sphi 0, %s135
    $region4: #{tpu_custom_call.1} parent=1 // loop_header_branch
      %19 = sbr.rel (%p17) target = $region8
    $region5: #{tpu_custom_call.1} parent=1 // loop_body
      %s21 = ssub.s32 %s16, 1
      %s22 = ssub.s32 %s16, 2
      %s32 = sadd.s32 1, %s25
      %p33 = scmp.ge.s32.totalorder %s32, 3
      %s34 = scalar_select %p33, 0, %s32
      %s35 = sadd.s32 1, %s24
      %s36 = scalar_select %p33, %s35, %s24
      %p37 = scmp.ge.s32.totalorder %s36, 1
      %s38 = scalar_select %p37, 0, %s36
      %s39 = sadd.s32 1, %s23
      %s40 = scalar_select %p37, %s39, %s23
      %p41 = scmp.ge.s32.totalorder %s40, 2
      %s42 = scalar_select %p41, 0, %s40
      %s43 = ssub.s32 %s23, %s42
      %s44 = ssub.s32 %s25, %s34
      %s45 = sor.u32 %s43, %s44
      %p46 = scmp.eq.s32.totalorder %s45, 0
      %s48 = sadd.s32 %s47, 1
      %s49 = scalar_select %p46, %s47, %s48
      %p52 = pneg %p46
      %p53 = scmp.eq.s32.totalorder %s16, 5
      %p54 = por %p52, %p53
      %p55 = scmp.ne.s32.totalorder %s47, %s50
      %p56 = scmp.eq.s32.totalorder %s16, 0
      %p57 = por %p55, %p56
      %p58 = scmp.ne.s32.totalorder %s47, %s50
      %p59 = scmp.eq.s32.totalorder %s21, 5
      %p60 = por %p58, %p59
      %p61 = scmp.ne.s32.totalorder %s50, %s51
      %p62 = scmp.eq.s32.totalorder %s21, 0
      %p63 = por %p61, %p62
      %p64 = scmp.ne.s32.totalorder %s50, %s51
      %p65 = scmp.eq.s32.totalorder %s22, 5
      %p66 = por %p64, %p65
      %p68 = scmp.ne.s32.totalorder %s51, %s67
      %p69 = scmp.eq.s32.totalorder %s22, 0
      %p70 = por %p68, %p69
      %s71 = ssub.s32 %s23, %s42
      %s72 = ssub.s32 %s24, %s38
      %s73 = sor.u32 %s71, %s72
      %p74 = scmp.eq.s32.totalorder %s73, 0
      %s76 = sadd.s32 %s75, 1
      %s77 = scalar_select %p74, %s75, %s76
      %p80 = pneg %p74
      %p81 = scmp.eq.s32.totalorder %s16, 5
      %p82 = por %p80, %p81
      %p83 = scmp.ne.s32.totalorder %s75, %s78
      %p84 = scmp.eq.s32.totalorder %s16, 0
      %p85 = por %p83, %p84
      %p86 = scmp.ne.s32.totalorder %s75, %s78
      %p87 = scmp.eq.s32.totalorder %s21, 5
      %p88 = por %p86, %p87
      %p89 = scmp.ne.s32.totalorder %s78, %s79
      %p90 = scmp.eq.s32.totalorder %s21, 0
      %p91 = por %p89, %p90
      %p92 = scmp.ne.s32.totalorder %s78, %s79
      %p93 = scmp.eq.s32.totalorder %s22, 5
      %p94 = por %p92, %p93
      %p96 = scmp.ne.s32.totalorder %s79, %s95
      %p97 = scmp.eq.s32.totalorder %s22, 0
      %p98 = por %p96, %p97
      %s99 = ssub.s32 %s23, %s42
      %s100 = ssub.s32 %s24, %s38
      %s101 = sor.u32 %s99, %s100
      %p102 = scmp.eq.s32.totalorder %s101, 0
      %s104 = sadd.s32 %s103, 1
      %s105 = scalar_select %p102, %s103, %s104
      %p108 = pneg %p102
      %p109 = scmp.eq.s32.totalorder %s16, 5
      %p110 = por %p108, %p109
      %p111 = scmp.ne.s32.totalorder %s103, %s106
      %p112 = scmp.eq.s32.totalorder %s16, 0
      %p113 = por %p111, %p112
      %p114 = scmp.ne.s32.totalorder %s103, %s106
      %p115 = scmp.eq.s32.totalorder %s21, 5
      %p116 = por %p114, %p115
      %p117 = scmp.ne.s32.totalorder %s106, %s107
      %p118 = scmp.eq.s32.totalorder %s21, 0
      %p119 = por %p117, %p118
      %p120 = scmp.ne.s32.totalorder %s106, %s107
      %p121 = scmp.eq.s32.totalorder %s22, 5
      %p122 = por %p120, %p121
      %p124 = scmp.ne.s32.totalorder %s107, %s123
      %p125 = scmp.eq.s32.totalorder %s22, 0
      %p126 = por %p124, %p125
      %s127 = ssub.s32 %s23, %s42
      %s128 = ssub.s32 %s24, %s38
      %s129 = sor.u32 %s127, %s128
      %p130 = scmp.eq.s32.totalorder %s129, 0
      %s132 = sadd.s32 %s131, 1
      %s133 = scalar_select %p130, %s131, %s132
      %p136 = pneg %p130
      %p137 = scmp.eq.s32.totalorder %s16, 5
      %p138 = por %p136, %p137
      %p139 = scmp.ne.s32.totalorder %s131, %s134
      %p140 = scmp.eq.s32.totalorder %s16, 0
      %p141 = por %p139, %p140
      %p142 = scmp.ne.s32.totalorder %s131, %s134
      %p143 = scmp.eq.s32.totalorder %s21, 5
      %p144 = por %p142, %p143
      %p145 = scmp.ne.s32.totalorder %s134, %s135
      %p146 = scmp.eq.s32.totalorder %s21, 0
      %p147 = por %p145, %p146
      %p148 = scmp.ne.s32.totalorder %s134, %s135
      %p149 = scmp.eq.s32.totalorder %s22, 5
      %p150 = por %p148, %p149
      %p152 = scmp.ne.s32.totalorder %s135, %s151
      %p153 = scmp.eq.s32.totalorder %s22, 0
      %p154 = por %p152, %p153
      %p155 = scmp.le.s32.totalorder 1, %s16
      %p156 = scmp.lt.s32.totalorder %s16, 7
      %p157 = pnand %p155, %p156
      %p158 = pneg %p157
      // Predicated region
      $region9: #{tpu_custom_call.1} parent=5 // pred_check
        _
      $region10: #{tpu_custom_call.1} parent=5 // pred_check_branch
        %160 = sbr.rel (%p157) target = $region12
      $region11: #{tpu_custom_call.1} parent=5 // pred_region
        %s161 = ssub.s32 %s16, 1
      $region12: #{tpu_custom_call.1} parent=5 // pred_fallthru
        _
      %p162 = scmp.lt.s32.totalorder %s16, 6
      // Predicated region
      $region13: #{tpu_custom_call.1} parent=5 // pred_check
        %p163 = pneg %p162
      $region14: #{tpu_custom_call.1} parent=5 // pred_check_branch
        %165 = sbr.rel (%p163) target = $region16
      $region15: #{tpu_custom_call.1} parent=5 // pred_region
        // Predicated region
        $region17: #{tpu_custom_call.1} parent=15 // pred_check
          %p166 = pneg %p57
        $region18: #{tpu_custom_call.1} parent=15 // pred_check_branch
          %168 = sbr.rel (%p166) target = $region20
        $region19: #{tpu_custom_call.1} parent=15 // pred_region
          %s169 = smul.u32 16, %s25
          %p170 = scmp.lt.s32.totalorder %s23, 1
          %s171 = scalar_select %p170, %s23, 1
          %p172 = scmp.lt.s32.totalorder %s169, 47
          %s173 = scalar_select %p172, %s169, 47
          %s174 = smul.addr %s171, 48
          %s175 = sadd.s32 %s173, %s174
          %s176 = smul.addr %s175, 8
          %s177 = scalar_lea.vmem %s0, %s176
          %s178 = smul.u32 16, %s25
        $region20: #{tpu_custom_call.1} parent=15 // pred_fallthru
          _
        // Predicated region
        $region21: #{tpu_custom_call.1} parent=15 // pred_check
          %p179 = pneg %p85
        $region22: #{tpu_custom_call.1} parent=15 // pred_check_branch
          %181 = sbr.rel (%p179) target = $region24
        $region23: #{tpu_custom_call.1} parent=15 // pred_region
          %s182 = smul.u32 2, %s24
          %p183 = scmp.lt.s32.totalorder %s23, 1
          %s184 = scalar_select %p183, %s23, 1
          %p185 = scmp.lt.s32.totalorder %s182, 1
          %s186 = scalar_select %p185, %s182, 1
          %s187 = smul.addr %s184, 2
          %s188 = sadd.s32 %s186, %s187
          %s189 = scalar_lea.vmem %s1, %s188
          %s190 = smul.u32 2, %s24
        $region24: #{tpu_custom_call.1} parent=15 // pred_fallthru
          _
      $region16: #{tpu_custom_call.1} parent=5 // pred_fallthru
        _
      %p191 = scmp.le.s32.totalorder 1, %s16
      %p192 = scmp.lt.s32.totalorder %s16, 7
      %p193 = pnand %p191, %p192
      %p194 = pneg %p193
      // Predicated region
      $region25: #{tpu_custom_call.1} parent=5 // pred_check
        _
      $region26: #{tpu_custom_call.1} parent=5 // pred_check_branch
        %196 = sbr.rel (%p193) target = $region28
      $region27: #{tpu_custom_call.1} parent=5 // pred_region
        %s197 = ssub.s32 %s16, 1
        %s198 = smul.u32 16, %s28
        %p199 = scmp.lt.s32.totalorder %s26, 1
        %s200 = scalar_select %p199, %s26, 1
        %p201 = scmp.lt.s32.totalorder %s198, 47
        %s202 = scalar_select %p201, %s198, 47
        %s203 = smul.addr %s200, 48
        %s204 = sadd.s32 %s202, %s203
        %s205 = smul.addr %s204, 8
        %s206 = scalar_lea.vmem %s0, %s205
        %p207 = pneg %p63
        %p208 = pneg %p60
        %s209 = smul.u32 2, %s27
        %p210 = scmp.lt.s32.totalorder %s26, 1
        %s211 = scalar_select %p210, %s26, 1
        %p212 = scmp.lt.s32.totalorder %s209, 1
        %s213 = scalar_select %p212, %s209, 1
        %s214 = smul.addr %s211, 2
        %s215 = sadd.s32 %s213, %s214
        %s216 = scalar_lea.vmem %s1, %s215
        %p217 = pneg %p91
        %p218 = pneg %p88
        %p219 = pneg %p119
        %p220 = pneg %p116
        %s221 = sand.u32 %s106, 1
        %s222 = scalar_lea.sflag [#allocation7], %s221
        %s223 = sand.u32 %s106, 1
        %s224 = smul.addr %s223, 16
        %s225 = scalar_lea.vmem [#allocation6], %s224
        %p226 = pneg %p147
        %p227 = pneg %p144
        %s228 = sand.u32 %s134, 1
        %s229 = scalar_lea.sflag [#allocation9], %s228
        %s230 = sand.u32 %s134, 1
        %s231 = smul.addr %s230, 2
        %s232 = scalar_lea.vmem [#allocation8], %s231
        %s233 = smul.u32 16, %s28
        %p234 = scmp.lt.s32.totalorder %s26, 1
        %s235 = scalar_select %p234, %s26, 1
        %p236 = scmp.lt.s32.totalorder %s233, 47
        %s237 = scalar_select %p236, %s233, 47
        %s238 = smul.addr %s235, 48
        %s239 = sadd.s32 %s237, %s238
        %s240 = smul.addr %s239, 8
        %s241 = scalar_lea.vmem %s0, %s240
        %s242 = smul.u32 16, %s28
        %s243 = smul.u32 2, %s27
        %p244 = scmp.lt.s32.totalorder %s26, 1
        %s245 = scalar_select %p244, %s26, 1
        %p246 = scmp.lt.s32.totalorder %s243, 1
        %s247 = scalar_select %p246, %s243, 1
        %s248 = smul.addr %s245, 2
        %s249 = sadd.s32 %s247, %s248
        %s250 = scalar_lea.vmem %s1, %s249
        %s251 = smul.u32 2, %s27
        %s252 = smul.u32 2, %s27
        %s253 = smul.u32 2, %s27
        %p255 = scmp.eq.s32.totalorder %s28, 0
        // Predicated region
        $region29: #{tpu_custom_call.1} parent=27 // pred_check
          %p256 = pneg %p255
        $region30: #{tpu_custom_call.1} parent=27 // pred_check_branch
          %258 = sbr.rel (%p256) target = $region32
        $region31: #{tpu_custom_call.1} parent=27 // pred_region
          %v259 = vlaneseq
          %vm260 = vcmp.ge.s32.totalorder %v259, 0
          %vm261 = vcmp.lt.s32.totalorder %v259, 256
          %vm262 = vmand %vm260, %vm261
          %263 = vst.msk [vmem:[#allocation3] sm:$0x3] %vm262, 0.0
          %264 = vst [vmem:[#allocation4] sm:$0xff] 0.0
          %265 = vst [vmem:[#allocation4 + $0x8] sm:$0xff] 0.0
          %vm266 = vcmask 0
          %267 = vst.msk [vmem:[#allocation5] sm:$0x1] %vm266, 0.0
          %v268 = vlaneseq
          %v269 = vshrl.u32 %v268, 7
          %v270 = vadd.s32 %v269, 8
          %v271 = vadd.s32 %v269, 16
          %v272 = vadd.s32 %v269, 24
          %v273 = vadd.s32 %v269, 32
          %v274 = vadd.s32 %v269, 40
          %v275 = vadd.s32 %v269, 48
          %v276 = vadd.s32 %v269, 56
          %v277 = vadd.s32 %v269, 64
          %v278 = vadd.s32 %v269, 72
          %v279 = vadd.s32 %v269, 80
          %v280 = vadd.s32 %v269, 88
          %v281 = vadd.s32 %v269, 96
          %v282 = vadd.s32 %v269, 104
          %v283 = vadd.s32 %v269, 112
          %v284 = vadd.s32 %v269, 120
          %v285 = vlaneseq
          %v286 = vand.u32 %v285, 127
          %vm287 = vcmp.ge.s32.totalorder %v269, %v286
          %vm288 = vcmp.ge.s32.totalorder %v270, %v286
          %vm289 = vcmp.ge.s32.totalorder %v271, %v286
          %vm290 = vcmp.ge.s32.totalorder %v272, %v286
          %vm291 = vcmp.ge.s32.totalorder %v273, %v286
          %vm292 = vcmp.ge.s32.totalorder %v274, %v286
          %vm293 = vcmp.ge.s32.totalorder %v275, %v286
          %vm294 = vcmp.ge.s32.totalorder %v276, %v286
          %vm295 = vcmp.ge.s32.totalorder %v277, %v286
          %vm296 = vcmp.ge.s32.totalorder %v278, %v286
          %vm297 = vcmp.ge.s32.totalorder %v279, %v286
          %vm298 = vcmp.ge.s32.totalorder %v280, %v286
          %vm299 = vcmp.ge.s32.totalorder %v281, %v286
          %vm300 = vcmp.ge.s32.totalorder %v282, %v286
          %vm301 = vcmp.ge.s32.totalorder %v283, %v286
          %vm302 = vcmp.ge.s32.totalorder %v284, %v286
          %v303 = vsel %vm287, 1, 0
          %v304 = vsel %vm288, 1, 0
          %v305 = vsel %vm289, 1, 0
          %v306 = vsel %vm290, 1, 0
          %v307 = vsel %vm291, 1, 0
          %v308 = vsel %vm292, 1, 0
          %v309 = vsel %vm293, 1, 0
          %v310 = vsel %vm294, 1, 0
          %v311 = vsel %vm295, 1, 0
          %v312 = vsel %vm296, 1, 0
          %v313 = vsel %vm297, 1, 0
          %v314 = vsel %vm298, 1, 0
          %v315 = vsel %vm299, 1, 0
          %v316 = vsel %vm300, 1, 0
          %v317 = vsel %vm301, 1, 0
          %v318 = vsel %vm302, 1, 0
          %v319 = vcvt.s32.f32 %v303
          %v320 = vcvt.s32.f32 %v304
          %v321 = vcvt.s32.f32 %v305
          %v322 = vcvt.s32.f32 %v306
          %v323 = vcvt.s32.f32 %v307
          %v324 = vcvt.s32.f32 %v308
          %v325 = vcvt.s32.f32 %v309
          %v326 = vcvt.s32.f32 %v310
          %v327 = vcvt.s32.f32 %v311
          %v328 = vcvt.s32.f32 %v312
          %v329 = vcvt.s32.f32 %v313
          %v330 = vcvt.s32.f32 %v314
          %v331 = vcvt.s32.f32 %v315
          %v332 = vcvt.s32.f32 %v316
          %v333 = vcvt.s32.f32 %v317
          %v334 = vcvt.s32.f32 %v318
          %v335 = vpack.c.bf16 %v320, %v319
          %v336 = vpack.c.bf16 %v322, %v321
          %v337 = vpack.c.bf16 %v324, %v323
          %v338 = vpack.c.bf16 %v326, %v325
          %v339 = vpack.c.bf16 %v328, %v327
          %v340 = vpack.c.bf16 %v330, %v329
          %v341 = vpack.c.bf16 %v332, %v331
          %v342 = vpack.c.bf16 %v334, %v333
          %343 = vst [vmem:[#allocation2] sm:$0xff] %v335
          %344 = vst [vmem:[#allocation2 + $0x8] sm:$0xff] %v336
          %345 = vst [vmem:[#allocation2 + $0x10] sm:$0xff] %v337
          %346 = vst [vmem:[#allocation2 + $0x18] sm:$0xff] %v338
          %347 = vst [vmem:[#allocation2 + $0x20] sm:$0xff] %v339
          %348 = vst [vmem:[#allocation2 + $0x28] sm:$0xff] %v340
          %349 = vst [vmem:[#allocation2 + $0x30] sm:$0xff] %v341
          %350 = vst [vmem:[#allocation2 + $0x38] sm:$0xff] %v342
        $region32: #{tpu_custom_call.1} parent=27 // pred_fallthru
          _
        %v351 = vld [vmem:[#allocation5] sm:$0x1]
        %s352 = vtos %v351
        %p353 = scmp.lt.f32.partialorder %s352, 6.0
        // Predicated region
        $region33: #{tpu_custom_call.1} parent=27 // pred_check
          %p354 = pneg %p353
        $region34: #{tpu_custom_call.1} parent=27 // pred_check_branch
          %356 = sbr.rel (%p354) target = $region36
        $region35: #{tpu_custom_call.1} parent=27 // pred_region
          %v357 = vld [vmem:[%s241] sm:$0xff]
          %v358 = vld [vmem:[%s241 + $0x8] sm:$0xff]
          %v359 = vld [vmem:[%s241 + $0x10] sm:$0xff]
          %v360 = vld [vmem:[%s241 + $0x18] sm:$0xff]
          %v361 = vld [vmem:[%s241 + $0x20] sm:$0xff]
          %v362 = vld [vmem:[%s241 + $0x28] sm:$0xff]
          %v363 = vld [vmem:[%s241 + $0x30] sm:$0xff]
          %v364 = vld [vmem:[%s241 + $0x38] sm:$0xff]
          %v365 = vld [vmem:[%s241 + $0x40] sm:$0xff]
          %v366 = vld [vmem:[%s241 + $0x48] sm:$0xff]
          %v367 = vld [vmem:[%s241 + $0x50] sm:$0xff]
          %v368 = vld [vmem:[%s241 + $0x58] sm:$0xff]
          %v369 = vld [vmem:[%s241 + $0x60] sm:$0xff]
          %v370 = vld [vmem:[%s241 + $0x68] sm:$0xff]
          %v371 = vld [vmem:[%s241 + $0x70] sm:$0xff]
          %v372 = vld [vmem:[%s241 + $0x78] sm:$0xff]
          %v373 = vld [vmem:[%s250] sm:$0x3]
          %v375 = vlaneseq
          %v376 = vshrl.u32 %v375, 7
          %v377 = vsub.s32 0, %v376
          %v378 = vrot.slane %v373, %v377
          %v379 = vlaneseq
          %v380 = vshrl.u32 %v379, 7
          %v381 = vsub.s32 1, %v380
          %v382 = vrot.slane %v373, %v381
          %386 = vset.pattern.permute.xlu0 0
          %387 = vperm.xlu0 %386, %v357
          %v388 = vpop.permute.xlu0 %387
          %391 = vset.pattern.permute.xlu0 0
          %392 = vperm.xlu0 %391, %v358
          %v393 = vpop.permute.xlu0 %392
          %396 = vset.pattern.permute.xlu0 0
          %397 = vperm.xlu0 %396, %v359
          %v398 = vpop.permute.xlu0 %397
          %401 = vset.pattern.permute.xlu0 0
          %402 = vperm.xlu0 %401, %v360
          %v403 = vpop.permute.xlu0 %402
          %406 = vset.pattern.permute.xlu0 0
          %407 = vperm.xlu0 %406, %v361
          %v408 = vpop.permute.xlu0 %407
          %411 = vset.pattern.permute.xlu0 0
          %412 = vperm.xlu0 %411, %v362
          %v413 = vpop.permute.xlu0 %412
          %416 = vset.pattern.permute.xlu0 0
          %417 = vperm.xlu0 %416, %v363
          %v418 = vpop.permute.xlu0 %417
          %421 = vset.pattern.permute.xlu0 0
          %422 = vperm.xlu0 %421, %v364
          %v423 = vpop.permute.xlu0 %422
          %426 = vset.pattern.permute.xlu0 0
          %427 = vperm.xlu0 %426, %v365
          %v428 = vpop.permute.xlu0 %427
          %431 = vset.pattern.permute.xlu0 0
          %432 = vperm.xlu0 %431, %v366
          %v433 = vpop.permute.xlu0 %432
          %436 = vset.pattern.permute.xlu0 0
          %437 = vperm.xlu0 %436, %v367
          %v438 = vpop.permute.xlu0 %437
          %441 = vset.pattern.permute.xlu0 0
          %442 = vperm.xlu0 %441, %v368
          %v443 = vpop.permute.xlu0 %442
          %446 = vset.pattern.permute.xlu0 0
          %447 = vperm.xlu0 %446, %v369
          %v448 = vpop.permute.xlu0 %447
          %451 = vset.pattern.permute.xlu0 0
          %452 = vperm.xlu0 %451, %v370
          %v453 = vpop.permute.xlu0 %452
          %456 = vset.pattern.permute.xlu0 0
          %457 = vperm.xlu0 %456, %v371
          %v458 = vpop.permute.xlu0 %457
          %461 = vset.pattern.permute.xlu0 0
          %462 = vperm.xlu0 %461, %v372
          %v463 = vpop.permute.xlu0 %462
          %v465 = vsub.f32 %v378, %v388
          %v466 = vsub.f32 %v382, %v388
          %v467 = vsub.f32 %v378, %v393
          %v468 = vsub.f32 %v382, %v393
          %v469 = vsub.f32 %v378, %v398
          %v470 = vsub.f32 %v382, %v398
          %v471 = vsub.f32 %v378, %v403
          %v472 = vsub.f32 %v382, %v403
          %v473 = vsub.f32 %v378, %v408
          %v474 = vsub.f32 %v382, %v408
          %v475 = vsub.f32 %v378, %v413
          %v476 = vsub.f32 %v382, %v413
          %v477 = vsub.f32 %v378, %v418
          %v478 = vsub.f32 %v382, %v418
          %v479 = vsub.f32 %v378, %v423
          %v480 = vsub.f32 %v382, %v423
          %v481 = vsub.f32 %v378, %v428
          %v482 = vsub.f32 %v382, %v428
          %v483 = vsub.f32 %v378, %v433
          %v484 = vsub.f32 %v382, %v433
          %v485 = vsub.f32 %v378, %v438
          %v486 = vsub.f32 %v382, %v438
          %v487 = vsub.f32 %v378, %v443
          %v488 = vsub.f32 %v382, %v443
          %v489 = vsub.f32 %v378, %v448
          %v490 = vsub.f32 %v382, %v448
          %v491 = vsub.f32 %v378, %v453
          %v492 = vsub.f32 %v382, %v453
          %v493 = vsub.f32 %v378, %v458
          %v494 = vsub.f32 %v382, %v458
          %v495 = vsub.f32 %v378, %v463
          %v496 = vsub.f32 %v382, %v463
          %v497 = vand.u32 2147483647, %v465
          %v498 = vand.u32 2147483647, %v466
          %v499 = vand.u32 2147483647, %v467
          %v500 = vand.u32 2147483647, %v468
          %v501 = vand.u32 2147483647, %v469
          %v502 = vand.u32 2147483647, %v470
          %v503 = vand.u32 2147483647, %v471
          %v504 = vand.u32 2147483647, %v472
          %v505 = vand.u32 2147483647, %v473
          %v506 = vand.u32 2147483647, %v474
          %v507 = vand.u32 2147483647, %v475
          %v508 = vand.u32 2147483647, %v476
          %v509 = vand.u32 2147483647, %v477
          %v510 = vand.u32 2147483647, %v478
          %v511 = vand.u32 2147483647, %v479
          %v512 = vand.u32 2147483647, %v480
          %v513 = vand.u32 2147483647, %v481
          %v514 = vand.u32 2147483647, %v482
          %v515 = vand.u32 2147483647, %v483
          %v516 = vand.u32 2147483647, %v484
          %v517 = vand.u32 2147483647, %v485
          %v518 = vand.u32 2147483647, %v486
          %v519 = vand.u32 2147483647, %v487
          %v520 = vand.u32 2147483647, %v488
          %v521 = vand.u32 2147483647, %v489
          %v522 = vand.u32 2147483647, %v490
          %v523 = vand.u32 2147483647, %v491
          %v524 = vand.u32 2147483647, %v492
          %v525 = vand.u32 2147483647, %v493
          %v526 = vand.u32 2147483647, %v494
          %v527 = vand.u32 2147483647, %v495
          %v528 = vand.u32 2147483647, %v496
          %vm529 = vcmp.lt.f32.partialorder %v497, 0.3
          %vm530 = vcmp.lt.f32.partialorder %v498, 0.3
          %vm531 = vcmp.lt.f32.partialorder %v499, 0.3
          %vm532 = vcmp.lt.f32.partialorder %v500, 0.3
          %vm533 = vcmp.lt.f32.partialorder %v501, 0.3
          %vm534 = vcmp.lt.f32.partialorder %v502, 0.3
          %vm535 = vcmp.lt.f32.partialorder %v503, 0.3
          %vm536 = vcmp.lt.f32.partialorder %v504, 0.3
          %vm537 = vcmp.lt.f32.partialorder %v505, 0.3
          %vm538 = vcmp.lt.f32.partialorder %v506, 0.3
          %vm539 = vcmp.lt.f32.partialorder %v507, 0.3
          %vm540 = vcmp.lt.f32.partialorder %v508, 0.3
          %vm541 = vcmp.lt.f32.partialorder %v509, 0.3
          %vm542 = vcmp.lt.f32.partialorder %v510, 0.3
          %vm543 = vcmp.lt.f32.partialorder %v511, 0.3
          %vm544 = vcmp.lt.f32.partialorder %v512, 0.3
          %vm545 = vcmp.lt.f32.partialorder %v513, 0.3
          %vm546 = vcmp.lt.f32.partialorder %v514, 0.3
          %vm547 = vcmp.lt.f32.partialorder %v515, 0.3
          %vm548 = vcmp.lt.f32.partialorder %v516, 0.3
          %vm549 = vcmp.lt.f32.partialorder %v517, 0.3
          %vm550 = vcmp.lt.f32.partialorder %v518, 0.3
          %vm551 = vcmp.lt.f32.partialorder %v519, 0.3
          %vm552 = vcmp.lt.f32.partialorder %v520, 0.3
          %vm553 = vcmp.lt.f32.partialorder %v521, 0.3
          %vm554 = vcmp.lt.f32.partialorder %v522, 0.3
          %vm555 = vcmp.lt.f32.partialorder %v523, 0.3
          %vm556 = vcmp.lt.f32.partialorder %v524, 0.3
          %vm557 = vcmp.lt.f32.partialorder %v525, 0.3
          %vm558 = vcmp.lt.f32.partialorder %v526, 0.3
          %vm559 = vcmp.lt.f32.partialorder %v527, 0.3
          %vm560 = vcmp.lt.f32.partialorder %v528, 0.3
          %v561 = vsel %vm529, 1, 0
          %v562 = vsel %vm530, 1, 0
          %v563 = vsel %vm531, 1, 0
          %v564 = vsel %vm532, 1, 0
          %v565 = vsel %vm533, 1, 0
          %v566 = vsel %vm534, 1, 0
          %v567 = vsel %vm535, 1, 0
          %v568 = vsel %vm536, 1, 0
          %v569 = vsel %vm537, 1, 0
          %v570 = vsel %vm538, 1, 0
          %v571 = vsel %vm539, 1, 0
          %v572 = vsel %vm540, 1, 0
          %v573 = vsel %vm541, 1, 0
          %v574 = vsel %vm542, 1, 0
          %v575 = vsel %vm543, 1, 0
          %v576 = vsel %vm544, 1, 0
          %v577 = vsel %vm545, 1, 0
          %v578 = vsel %vm546, 1, 0
          %v579 = vsel %vm547, 1, 0
          %v580 = vsel %vm548, 1, 0
          %v581 = vsel %vm549, 1, 0
          %v582 = vsel %vm550, 1, 0
          %v583 = vsel %vm551, 1, 0
          %v584 = vsel %vm552, 1, 0
          %v585 = vsel %vm553, 1, 0
          %v586 = vsel %vm554, 1, 0
          %v587 = vsel %vm555, 1, 0
          %v588 = vsel %vm556, 1, 0
          %v589 = vsel %vm557, 1, 0
          %v590 = vsel %vm558, 1, 0
          %v591 = vsel %vm559, 1, 0
          %v592 = vsel %vm560, 1, 0
          %v593 = vcvt.s32.f32 %v561
          %v594 = vcvt.s32.f32 %v562
          %v595 = vcvt.s32.f32 %v563
          %v596 = vcvt.s32.f32 %v564
          %v597 = vcvt.s32.f32 %v565
          %v598 = vcvt.s32.f32 %v566
          %v599 = vcvt.s32.f32 %v567
          %v600 = vcvt.s32.f32 %v568
          %v601 = vcvt.s32.f32 %v569
          %v602 = vcvt.s32.f32 %v570
          %v603 = vcvt.s32.f32 %v571
          %v604 = vcvt.s32.f32 %v572
          %v605 = vcvt.s32.f32 %v573
          %v606 = vcvt.s32.f32 %v574
          %v607 = vcvt.s32.f32 %v575
          %v608 = vcvt.s32.f32 %v576
          %v609 = vcvt.s32.f32 %v577
          %v610 = vcvt.s32.f32 %v578
          %v611 = vcvt.s32.f32 %v579
          %v612 = vcvt.s32.f32 %v580
          %v613 = vcvt.s32.f32 %v581
          %v614 = vcvt.s32.f32 %v582
          %v615 = vcvt.s32.f32 %v583
          %v616 = vcvt.s32.f32 %v584
          %v617 = vcvt.s32.f32 %v585
          %v618 = vcvt.s32.f32 %v586
          %v619 = vcvt.s32.f32 %v587
          %v620 = vcvt.s32.f32 %v588
          %v621 = vcvt.s32.f32 %v589
          %v622 = vcvt.s32.f32 %v590
          %v623 = vcvt.s32.f32 %v591
          %v624 = vcvt.s32.f32 %v592
          %v625 = vpack.c.bf16 %v595, %v593
          %v626 = vpack.c.bf16 %v596, %v594
          %v627 = vpack.c.bf16 %v599, %v597
          %v628 = vpack.c.bf16 %v600, %v598
          %v629 = vpack.c.bf16 %v603, %v601
          %v630 = vpack.c.bf16 %v604, %v602
          %v631 = vpack.c.bf16 %v607, %v605
          %v632 = vpack.c.bf16 %v608, %v606
          %v633 = vpack.c.bf16 %v611, %v609
          %v634 = vpack.c.bf16 %v612, %v610
          %v635 = vpack.c.bf16 %v615, %v613
          %v636 = vpack.c.bf16 %v616, %v614
          %v637 = vpack.c.bf16 %v619, %v617
          %v638 = vpack.c.bf16 %v620, %v618
          %v639 = vpack.c.bf16 %v623, %v621
          %v640 = vpack.c.bf16 %v624, %v622
          %v641 = vld [vmem:[#allocation2] sm:$0xff]
          %v642 = vld [vmem:[#allocation2 + $0x8] sm:$0xff]
          %v643 = vld [vmem:[#allocation2 + $0x10] sm:$0xff]
          %v644 = vld [vmem:[#allocation2 + $0x18] sm:$0xff]
          %v645 = vld [vmem:[#allocation2 + $0x20] sm:$0xff]
          %v646 = vld [vmem:[#allocation2 + $0x28] sm:$0xff]
          %v647 = vld [vmem:[#allocation2 + $0x30] sm:$0xff]
          %v648 = vld [vmem:[#allocation2 + $0x38] sm:$0xff]
          %v649 = vld [vmem:[#allocation3] sm:$0x3]
          %v651 = vlaneseq
          %v652 = vshrl.u32 %v651, 7
          %v653 = vsub.s32 0, %v652
          %v654 = vrot.slane %v649, %v653
          %v655 = vlaneseq
          %v656 = vshrl.u32 %v655, 7
          %v657 = vsub.s32 1, %v656
          %v658 = vrot.slane %v649, %v657
          %661 = vmatprep.subr.bf16.mxu0 %v626
          %662 = vmatpush1.bf16.msra.mxu0 %v625
          %663 = vmatprep.subr.bf16.mxu0 %v628
          %664 = vmatpush1.bf16.msra.mxu0 %v627
          %665 = vmatprep.subr.bf16.mxu0 %v630
          %666 = vmatpush1.bf16.msra.mxu0 %v629
          %667 = vmatprep.subr.bf16.mxu0 %v632
          %668 = vmatpush1.bf16.msra.mxu0 %v631
          %669 = vmatprep.subr.bf16.mxu0 %v634
          %670 = vmatpush1.bf16.msra.mxu0 %v633
          %671 = vmatprep.subr.bf16.mxu0 %v636
          %672 = vmatpush1.bf16.msra.mxu0 %v635
          %673 = vmatprep.subr.bf16.mxu0 %v638
          %674 = vmatpush1.bf16.msra.mxu0 %v637
          %675 = vmatprep.subr.bf16.mxu0 %v640
          %676 = vmatpush1.bf16.msra.mxu0 %v639
          %677 = vmatprep.subr.bf16.mxu0 0
          %678 = vmatpush1.bf16.msra.mxu0 0
          %679 = vmatprep.subr.bf16.mxu0 0
          %680 = vmatpush1.bf16.msra.mxu0 0
          %681 = vmatprep.subr.bf16.mxu0 0
          %682 = vmatpush1.bf16.msra.mxu0 0
          %683 = vmatprep.subr.bf16.mxu0 0
          %684 = vmatpush1.bf16.msra.mxu0 0
          %685 = vmatprep.subr.bf16.mxu0 0
          %686 = vmatpush1.bf16.msra.mxu0 0
          %687 = vmatprep.subr.bf16.mxu0 0
          %688 = vmatpush1.bf16.msra.mxu0 0
          %689 = vmatprep.subr.bf16.mxu0 0
          %690 = vmatpush1.bf16.msra.mxu0 0
          %691 = vmatprep.subr.bf16.mxu0 0
          %692 = vmatpush1.bf16.msra.mxu0 0
          %693 = vmatprep.mubr.bf16.mxu0 0
          %694 = vmatmul.mubr.bf16.gmra.mrb[0].mxu0 %v641
          %v695 = vpop.f32.mrb[0].mxu0
          %v696 = vadd.f32 %v654, %v695
          %v697 = vpop.f32.mrb[0].mxu0
          %v698 = vadd.f32 %v658, %v697
          %v699 = vpop.f32.mrb[0].mxu0
          %v700 = vadd.f32 %v654, %v699
          %v701 = vpop.f32.mrb[0].mxu0
          %v702 = vadd.f32 %v658, %v701
          %703 = vmatprep.mubr.bf16.mxu0 0
          %704 = vmatmul.mubr.bf16.gmra.mrb[0].mxu0 %v642
          %v705 = vpop.f32.mrb[0].mxu0
          %v706 = vadd.f32 %v654, %v705
          %v707 = vpop.f32.mrb[0].mxu0
          %v708 = vadd.f32 %v658, %v707
          %v709 = vpop.f32.mrb[0].mxu0
          %v710 = vadd.f32 %v654, %v709
          %v711 = vpop.f32.mrb[0].mxu0
          %v712 = vadd.f32 %v658, %v711
          %713 = vmatprep.mubr.bf16.mxu0 0
          %714 = vmatmul.mubr.bf16.gmra.mrb[0].mxu0 %v643
          %v715 = vpop.f32.mrb[0].mxu0
          %v716 = vadd.f32 %v654, %v715
          %v717 = vpop.f32.mrb[0].mxu0
          %v718 = vadd.f32 %v658, %v717
          %v719 = vpop.f32.mrb[0].mxu0
          %v720 = vadd.f32 %v654, %v719
          %v721 = vpop.f32.mrb[0].mxu0
          %v722 = vadd.f32 %v658, %v721
          %723 = vmatprep.mubr.bf16.mxu0 0
          %724 = vmatmul.mubr.bf16.gmra.mrb[0].mxu0 %v644
          %v725 = vpop.f32.mrb[0].mxu0
          %v726 = vadd.f32 %v654, %v725
          %v727 = vpop.f32.mrb[0].mxu0
          %v728 = vadd.f32 %v658, %v727
          %v729 = vpop.f32.mrb[0].mxu0
          %v730 = vadd.f32 %v654, %v729
          %v731 = vpop.f32.mrb[0].mxu0
          %v732 = vadd.f32 %v658, %v731
          %733 = vmatprep.mubr.bf16.mxu0 0
          %734 = vmatmul.mubr.bf16.gmra.mrb[0].mxu0 %v645
          %v735 = vpop.f32.mrb[0].mxu0
          %v736 = vadd.f32 %v654, %v735
          %v737 = vpop.f32.mrb[0].mxu0
          %v738 = vadd.f32 %v658, %v737
          %v739 = vpop.f32.mrb[0].mxu0
          %v740 = vadd.f32 %v654, %v739
          %v741 = vpop.f32.mrb[0].mxu0
          %v742 = vadd.f32 %v658, %v741
          %743 = vmatprep.mubr.bf16.mxu0 0
          %744 = vmatmul.mubr.bf16.gmra.mrb[0].mxu0 %v646
          %v745 = vpop.f32.mrb[0].mxu0
          %v746 = vadd.f32 %v654, %v745
          %v747 = vpop.f32.mrb[0].mxu0
          %v748 = vadd.f32 %v658, %v747
          %v749 = vpop.f32.mrb[0].mxu0
          %v750 = vadd.f32 %v654, %v749
          %v751 = vpop.f32.mrb[0].mxu0
          %v752 = vadd.f32 %v658, %v751
          %753 = vmatprep.mubr.bf16.mxu0 0
          %754 = vmatmul.mubr.bf16.gmra.mrb[0].mxu0 %v647
          %v755 = vpop.f32.mrb[0].mxu0
          %v756 = vadd.f32 %v654, %v755
          %v757 = vpop.f32.mrb[0].mxu0
          %v758 = vadd.f32 %v658, %v757
          %v759 = vpop.f32.mrb[0].mxu0
          %v760 = vadd.f32 %v654, %v759
          %v761 = vpop.f32.mrb[0].mxu0
          %v762 = vadd.f32 %v658, %v761
          %763 = vmatprep.mubr.bf16.mxu0 0
          %764 = vmatmul.mubr.bf16.gmra.mrb[0].mxu0 %v648
          %v765 = vpop.f32.mrb[0].mxu0
          %v766 = vadd.f32 %v654, %v765
          %v767 = vpop.f32.mrb[0].mxu0
          %v768 = vadd.f32 %v658, %v767
          %v769 = vpop.f32.mrb[0].mxu0
          %v770 = vadd.f32 %v654, %v769
          %v771 = vpop.f32.mrb[0].mxu0
          %v772 = vadd.f32 %v658, %v771
          %773 = vdwg.mxu0
          %v774 = vmin.f32 %v696, 6.0
          %v775 = vmin.f32 %v698, 6.0
          %v776 = vmin.f32 %v700, 6.0
          %v777 = vmin.f32 %v702, 6.0
          %v778 = vmin.f32 %v706, 6.0
          %v779 = vmin.f32 %v708, 6.0
          %v780 = vmin.f32 %v710, 6.0
          %v781 = vmin.f32 %v712, 6.0
          %v782 = vmin.f32 %v716, 6.0
          %v783 = vmin.f32 %v718, 6.0
          %v784 = vmin.f32 %v720, 6.0
          %v785 = vmin.f32 %v722, 6.0
          %v786 = vmin.f32 %v726, 6.0
          %v787 = vmin.f32 %v728, 6.0
          %v788 = vmin.f32 %v730, 6.0
          %v789 = vmin.f32 %v732, 6.0
          %v790 = vmin.f32 %v736, 6.0
          %v791 = vmin.f32 %v738, 6.0
          %v792 = vmin.f32 %v740, 6.0
          %v793 = vmin.f32 %v742, 6.0
          %v794 = vmin.f32 %v746, 6.0
          %v795 = vmin.f32 %v748, 6.0
          %v796 = vmin.f32 %v750, 6.0
          %v797 = vmin.f32 %v752, 6.0
          %v798 = vmin.f32 %v756, 6.0
          %v799 = vmin.f32 %v758, 6.0
          %v800 = vmin.f32 %v760, 6.0
          %v801 = vmin.f32 %v762, 6.0
          %v802 = vmin.f32 %v766, 6.0
          %v803 = vmin.f32 %v768, 6.0
          %v804 = vmin.f32 %v770, 6.0
          %v805 = vmin.f32 %v772, 6.0
          %vm806 = vcmp.le.f32.partialorder %v774, 0.0
          %vm807 = vcmp.le.f32.partialorder %v775, 0.0
          %vm808 = vcmp.le.f32.partialorder %v776, 0.0
          %vm809 = vcmp.le.f32.partialorder %v777, 0.0
          %vm810 = vcmp.le.f32.partialorder %v778, 0.0
          %vm811 = vcmp.le.f32.partialorder %v779, 0.0
          %vm812 = vcmp.le.f32.partialorder %v780, 0.0
          %vm813 = vcmp.le.f32.partialorder %v781, 0.0
          %vm814 = vcmp.le.f32.partialorder %v782, 0.0
          %vm815 = vcmp.le.f32.partialorder %v783, 0.0
          %vm816 = vcmp.le.f32.partialorder %v784, 0.0
          %vm817 = vcmp.le.f32.partialorder %v785, 0.0
          %vm818 = vcmp.le.f32.partialorder %v786, 0.0
          %vm819 = vcmp.le.f32.partialorder %v787, 0.0
          %vm820 = vcmp.le.f32.partialorder %v788, 0.0
          %vm821 = vcmp.le.f32.partialorder %v789, 0.0
          %vm822 = vcmp.le.f32.partialorder %v790, 0.0
          %vm823 = vcmp.le.f32.partialorder %v791, 0.0
          %vm824 = vcmp.le.f32.partialorder %v792, 0.0
          %vm825 = vcmp.le.f32.partialorder %v793, 0.0
          %vm826 = vcmp.le.f32.partialorder %v794, 0.0
          %vm827 = vcmp.le.f32.partialorder %v795, 0.0
          %vm828 = vcmp.le.f32.partialorder %v796, 0.0
          %vm829 = vcmp.le.f32.partialorder %v797, 0.0
          %vm830 = vcmp.le.f32.partialorder %v798, 0.0
          %vm831 = vcmp.le.f32.partialorder %v799, 0.0
          %vm832 = vcmp.le.f32.partialorder %v800, 0.0
          %vm833 = vcmp.le.f32.partialorder %v801, 0.0
          %vm834 = vcmp.le.f32.partialorder %v802, 0.0
          %vm835 = vcmp.le.f32.partialorder %v803, 0.0
          %vm836 = vcmp.le.f32.partialorder %v804, 0.0
          %vm837 = vcmp.le.f32.partialorder %v805, 0.0
          %v838 = vsel %vm806, 1, 0
          %v839 = vsel %vm807, 1, 0
          %v840 = vsel %vm808, 1, 0
          %v841 = vsel %vm809, 1, 0
          %v842 = vsel %vm810, 1, 0
          %v843 = vsel %vm811, 1, 0
          %v844 = vsel %vm812, 1, 0
          %v845 = vsel %vm813, 1, 0
          %v846 = vsel %vm814, 1, 0
          %v847 = vsel %vm815, 1, 0
          %v848 = vsel %vm816, 1, 0
          %v849 = vsel %vm817, 1, 0
          %v850 = vsel %vm818, 1, 0
          %v851 = vsel %vm819, 1, 0
          %v852 = vsel %vm820, 1, 0
          %v853 = vsel %vm821, 1, 0
          %v854 = vsel %vm822, 1, 0
          %v855 = vsel %vm823, 1, 0
          %v856 = vsel %vm824, 1, 0
          %v857 = vsel %vm825, 1, 0
          %v858 = vsel %vm826, 1, 0
          %v859 = vsel %vm827, 1, 0
          %v860 = vsel %vm828, 1, 0
          %v861 = vsel %vm829, 1, 0
          %v862 = vsel %vm830, 1, 0
          %v863 = vsel %vm831, 1, 0
          %v864 = vsel %vm832, 1, 0
          %v865 = vsel %vm833, 1, 0
          %v866 = vsel %vm834, 1, 0
          %v867 = vsel %vm835, 1, 0
          %v868 = vsel %vm836, 1, 0
          %v869 = vsel %vm837, 1, 0
          %v870 = vcvt.s32.f32 %v838
          %v871 = vcvt.s32.f32 %v839
          %v872 = vcvt.s32.f32 %v840
          %v873 = vcvt.s32.f32 %v841
          %v874 = vcvt.s32.f32 %v842
          %v875 = vcvt.s32.f32 %v843
          %v876 = vcvt.s32.f32 %v844
          %v877 = vcvt.s32.f32 %v845
          %v878 = vcvt.s32.f32 %v846
          %v879 = vcvt.s32.f32 %v847
          %v880 = vcvt.s32.f32 %v848
          %v881 = vcvt.s32.f32 %v849
          %v882 = vcvt.s32.f32 %v850
          %v883 = vcvt.s32.f32 %v851
          %v884 = vcvt.s32.f32 %v852
          %v885 = vcvt.s32.f32 %v853
          %v886 = vcvt.s32.f32 %v854
          %v887 = vcvt.s32.f32 %v855
          %v888 = vcvt.s32.f32 %v856
          %v889 = vcvt.s32.f32 %v857
          %v890 = vcvt.s32.f32 %v858
          %v891 = vcvt.s32.f32 %v859
          %v892 = vcvt.s32.f32 %v860
          %v893 = vcvt.s32.f32 %v861
          %v894 = vcvt.s32.f32 %v862
          %v895 = vcvt.s32.f32 %v863
          %v896 = vcvt.s32.f32 %v864
          %v897 = vcvt.s32.f32 %v865
          %v898 = vcvt.s32.f32 %v866
          %v899 = vcvt.s32.f32 %v867
          %v900 = vcvt.s32.f32 %v868
          %v901 = vcvt.s32.f32 %v869
          %v902 = vadd.f32 %v870, %v872
          %v903 = vadd.f32 %v902, %v874
          %v904 = vadd.f32 %v903, %v876
          %v905 = vadd.f32 %v904, %v878
          %v906 = vadd.f32 %v905, %v880
          %v907 = vadd.f32 %v906, %v882
          %v908 = vadd.f32 %v907, %v884
          %v909 = vadd.f32 %v908, %v886
          %v910 = vadd.f32 %v909, %v888
          %v911 = vadd.f32 %v910, %v890
          %v912 = vadd.f32 %v911, %v892
          %v913 = vadd.f32 %v912, %v894
          %v914 = vadd.f32 %v913, %v896
          %v915 = vadd.f32 %v914, %v898
          %v916 = vadd.f32 %v915, %v900
          %v917 = vrot.slane %v916, 4
          %v918 = vadd.f32 %v916, %v917
          %v919 = vrot.slane %v918, 2
          %v920 = vadd.f32 %v918, %v919
          %v921 = vrot.slane %v920, 1
          %v922 = vadd.f32 %v920, %v921
          %v923 = vadd.f32 %v871, %v873
          %v924 = vadd.f32 %v923, %v875
          %v925 = vadd.f32 %v924, %v877
          %v926 = vadd.f32 %v925, %v879
          %v927 = vadd.f32 %v926, %v881
          %v928 = vadd.f32 %v927, %v883
          %v929 = vadd.f32 %v928, %v885
          %v930 = vadd.f32 %v929, %v887
          %v931 = vadd.f32 %v930, %v889
          %v932 = vadd.f32 %v931, %v891
          %v933 = vadd.f32 %v932, %v893
          %v934 = vadd.f32 %v933, %v895
          %v935 = vadd.f32 %v934, %v897
          %v936 = vadd.f32 %v935, %v899
          %v937 = vadd.f32 %v936, %v901
          %v938 = vrot.slane %v937, 4
          %v939 = vadd.f32 %v937, %v938
          %v940 = vrot.slane %v939, 2
          %v941 = vadd.f32 %v939, %v940
          %v942 = vrot.slane %v941, 1
          %v943 = vadd.f32 %v941, %v942
          %vm944 = vcmp.le.f32.partialorder %v774, 1.0
          %vm945 = vcmp.le.f32.partialorder %v775, 1.0
          %vm946 = vcmp.le.f32.partialorder %v776, 1.0
          %vm947 = vcmp.le.f32.partialorder %v777, 1.0
          %vm948 = vcmp.le.f32.partialorder %v778, 1.0
          %vm949 = vcmp.le.f32.partialorder %v779, 1.0
          %vm950 = vcmp.le.f32.partialorder %v780, 1.0
          %vm951 = vcmp.le.f32.partialorder %v781, 1.0
          %vm952 = vcmp.le.f32.partialorder %v782, 1.0
          %vm953 = vcmp.le.f32.partialorder %v783, 1.0
          %vm954 = vcmp.le.f32.partialorder %v784, 1.0
          %vm955 = vcmp.le.f32.partialorder %v785, 1.0
          %vm956 = vcmp.le.f32.partialorder %v786, 1.0
          %vm957 = vcmp.le.f32.partialorder %v787, 1.0
          %vm958 = vcmp.le.f32.partialorder %v788, 1.0
          %vm959 = vcmp.le.f32.partialorder %v789, 1.0
          %vm960 = vcmp.le.f32.partialorder %v790, 1.0
          %vm961 = vcmp.le.f32.partialorder %v791, 1.0
          %vm962 = vcmp.le.f32.partialorder %v792, 1.0
          %vm963 = vcmp.le.f32.partialorder %v793, 1.0
          %vm964 = vcmp.le.f32.partialorder %v794, 1.0
          %vm965 = vcmp.le.f32.partialorder %v795, 1.0
          %vm966 = vcmp.le.f32.partialorder %v796, 1.0
          %vm967 = vcmp.le.f32.partialorder %v797, 1.0
          %vm968 = vcmp.le.f32.partialorder %v798, 1.0
          %vm969 = vcmp.le.f32.partialorder %v799, 1.0
          %vm970 = vcmp.le.f32.partialorder %v800, 1.0
          %vm971 = vcmp.le.f32.partialorder %v801, 1.0
          %vm972 = vcmp.le.f32.partialorder %v802, 1.0
          %vm973 = vcmp.le.f32.partialorder %v803, 1.0
          %vm974 = vcmp.le.f32.partialorder %v804, 1.0
          %vm975 = vcmp.le.f32.partialorder %v805, 1.0
          %v976 = vsel %vm944, 1, 0
          %v977 = vsel %vm945, 1, 0
          %v978 = vsel %vm946, 1, 0
          %v979 = vsel %vm947, 1, 0
          %v980 = vsel %vm948, 1, 0
          %v981 = vsel %vm949, 1, 0
          %v982 = vsel %vm950, 1, 0
          %v983 = vsel %vm951, 1, 0
          %v984 = vsel %vm952, 1, 0
          %v985 = vsel %vm953, 1, 0
          %v986 = vsel %vm954, 1, 0
          %v987 = vsel %vm955, 1, 0
          %v988 = vsel %vm956, 1, 0
          %v989 = vsel %vm957, 1, 0
          %v990 = vsel %vm958, 1, 0
          %v991 = vsel %vm959, 1, 0
          %v992 = vsel %vm960, 1, 0
          %v993 = vsel %vm961, 1, 0
          %v994 = vsel %vm962, 1, 0
          %v995 = vsel %vm963, 1, 0
          %v996 = vsel %vm964, 1, 0
          %v997 = vsel %vm965, 1, 0
          %v998 = vsel %vm966, 1, 0
          %v999 = vsel %vm967, 1, 0
          %v1000 = vsel %vm968, 1, 0
          %v1001 = vsel %vm969, 1, 0
          %v1002 = vsel %vm970, 1, 0
          %v1003 = vsel %vm971, 1, 0
          %v1004 = vsel %vm972, 1, 0
          %v1005 = vsel %vm973, 1, 0
          %v1006 = vsel %vm974, 1, 0
          %v1007 = vsel %vm975, 1, 0
          %v1008 = vcvt.s32.f32 %v976
          %v1009 = vcvt.s32.f32 %v977
          %v1010 = vcvt.s32.f32 %v978
          %v1011 = vcvt.s32.f32 %v979
          %v1012 = vcvt.s32.f32 %v980
          %v1013 = vcvt.s32.f32 %v981
          %v1014 = vcvt.s32.f32 %v982
          %v1015 = vcvt.s32.f32 %v983
          %v1016 = vcvt.s32.f32 %v984
          %v1017 = vcvt.s32.f32 %v985
          %v1018 = vcvt.s32.f32 %v986
          %v1019 = vcvt.s32.f32 %v987
          %v1020 = vcvt.s32.f32 %v988
          %v1021 = vcvt.s32.f32 %v989
          %v1022 = vcvt.s32.f32 %v990
          %v1023 = vcvt.s32.f32 %v991
          %v1024 = vcvt.s32.f32 %v992
          %v1025 = vcvt.s32.f32 %v993
          %v1026 = vcvt.s32.f32 %v994
          %v1027 = vcvt.s32.f32 %v995
          %v1028 = vcvt.s32.f32 %v996
          %v1029 = vcvt.s32.f32 %v997
          %v1030 = vcvt.s32.f32 %v998
          %v1031 = vcvt.s32.f32 %v999
          %v1032 = vcvt.s32.f32 %v1000
          %v1033 = vcvt.s32.f32 %v1001
          %v1034 = vcvt.s32.f32 %v1002
          %v1035 = vcvt.s32.f32 %v1003
          %v1036 = vcvt.s32.f32 %v1004
          %v1037 = vcvt.s32.f32 %v1005
          %v1038 = vcvt.s32.f32 %v1006
          %v1039 = vcvt.s32.f32 %v1007
          %v1040 = vadd.f32 %v1008, %v1010
          %v1041 = vadd.f32 %v1040, %v1012
          %v1042 = vadd.f32 %v1041, %v1014
          %v1043 = vadd.f32 %v1042, %v1016
          %v1044 = vadd.f32 %v1043, %v1018
          %v1045 = vadd.f32 %v1044, %v1020
          %v1046 = vadd.f32 %v1045, %v1022
          %v1047 = vadd.f32 %v1046, %v1024
          %v1048 = vadd.f32 %v1047, %v1026
          %v1049 = vadd.f32 %v1048, %v1028
          %v1050 = vadd.f32 %v1049, %v1030
          %v1051 = vadd.f32 %v1050, %v1032
          %v1052 = vadd.f32 %v1051, %v1034
          %v1053 = vadd.f32 %v1052, %v1036
          %v1054 = vadd.f32 %v1053, %v1038
          %v1055 = vrot.slane %v1054, 4
          %v1056 = vadd.f32 %v1054, %v1055
          %v1057 = vrot.slane %v1056, 2
          %v1058 = vadd.f32 %v1056, %v1057
          %v1059 = vrot.slane %v1058, 1
          %v1060 = vadd.f32 %v1058, %v1059
          %v1061 = vadd.f32 %v1009, %v1011
          %v1062 = vadd.f32 %v1061, %v1013
          %v1063 = vadd.f32 %v1062, %v1015
          %v1064 = vadd.f32 %v1063, %v1017
          %v1065 = vadd.f32 %v1064, %v1019
          %v1066 = vadd.f32 %v1065, %v1021
          %v1067 = vadd.f32 %v1066, %v1023
          %v1068 = vadd.f32 %v1067, %v1025
          %v1069 = vadd.f32 %v1068, %v1027
          %v1070 = vadd.f32 %v1069, %v1029
          %v1071 = vadd.f32 %v1070, %v1031
          %v1072 = vadd.f32 %v1071, %v1033
          %v1073 = vadd.f32 %v1072, %v1035
          %v1074 = vadd.f32 %v1073, %v1037
          %v1075 = vadd.f32 %v1074, %v1039
          %v1076 = vrot.slane %v1075, 4
          %v1077 = vadd.f32 %v1075, %v1076
          %v1078 = vrot.slane %v1077, 2
          %v1079 = vadd.f32 %v1077, %v1078
          %v1080 = vrot.slane %v1079, 1
          %v1081 = vadd.f32 %v1079, %v1080
          %vm1082 = vcmp.le.f32.partialorder %v774, 2.0
          %vm1083 = vcmp.le.f32.partialorder %v775, 2.0
          %vm1084 = vcmp.le.f32.partialorder %v776, 2.0
          %vm1085 = vcmp.le.f32.partialorder %v777, 2.0
          %vm1086 = vcmp.le.f32.partialorder %v778, 2.0
          %vm1087 = vcmp.le.f32.partialorder %v779, 2.0
          %vm1088 = vcmp.le.f32.partialorder %v780, 2.0
          %vm1089 = vcmp.le.f32.partialorder %v781, 2.0
          %vm1090 = vcmp.le.f32.partialorder %v782, 2.0
          %vm1091 = vcmp.le.f32.partialorder %v783, 2.0
          %vm1092 = vcmp.le.f32.partialorder %v784, 2.0
          %vm1093 = vcmp.le.f32.partialorder %v785, 2.0
          %vm1094 = vcmp.le.f32.partialorder %v786, 2.0
          %vm1095 = vcmp.le.f32.partialorder %v787, 2.0
          %vm1096 = vcmp.le.f32.partialorder %v788, 2.0
          %vm1097 = vcmp.le.f32.partialorder %v789, 2.0
          %vm1098 = vcmp.le.f32.partialorder %v790, 2.0
          %vm1099 = vcmp.le.f32.partialorder %v791, 2.0
          %vm1100 = vcmp.le.f32.partialorder %v792, 2.0
          %vm1101 = vcmp.le.f32.partialorder %v793, 2.0
          %vm1102 = vcmp.le.f32.partialorder %v794, 2.0
          %vm1103 = vcmp.le.f32.partialorder %v795, 2.0
          %vm1104 = vcmp.le.f32.partialorder %v796, 2.0
          %vm1105 = vcmp.le.f32.partialorder %v797, 2.0
          %vm1106 = vcmp.le.f32.partialorder %v798, 2.0
          %vm1107 = vcmp.le.f32.partialorder %v799, 2.0
          %vm1108 = vcmp.le.f32.partialorder %v800, 2.0
          %vm1109 = vcmp.le.f32.partialorder %v801, 2.0
          %vm1110 = vcmp.le.f32.partialorder %v802, 2.0
          %vm1111 = vcmp.le.f32.partialorder %v803, 2.0
          %vm1112 = vcmp.le.f32.partialorder %v804, 2.0
          %vm1113 = vcmp.le.f32.partialorder %v805, 2.0
          %v1114 = vsel %vm1082, 1, 0
          %v1115 = vsel %vm1083, 1, 0
          %v1116 = vsel %vm1084, 1, 0
          %v1117 = vsel %vm1085, 1, 0
          %v1118 = vsel %vm1086, 1, 0
          %v1119 = vsel %vm1087, 1, 0
          %v1120 = vsel %vm1088, 1, 0
          %v1121 = vsel %vm1089, 1, 0
          %v1122 = vsel %vm1090, 1, 0
          %v1123 = vsel %vm1091, 1, 0
          %v1124 = vsel %vm1092, 1, 0
          %v1125 = vsel %vm1093, 1, 0
          %v1126 = vsel %vm1094, 1, 0
          %v1127 = vsel %vm1095, 1, 0
          %v1128 = vsel %vm1096, 1, 0
          %v1129 = vsel %vm1097, 1, 0
          %v1130 = vsel %vm1098, 1, 0
          %v1131 = vsel %vm1099, 1, 0
          %v1132 = vsel %vm1100, 1, 0
          %v1133 = vsel %vm1101, 1, 0
          %v1134 = vsel %vm1102, 1, 0
          %v1135 = vsel %vm1103, 1, 0
          %v1136 = vsel %vm1104, 1, 0
          %v1137 = vsel %vm1105, 1, 0
          %v1138 = vsel %vm1106, 1, 0
          %v1139 = vsel %vm1107, 1, 0
          %v1140 = vsel %vm1108, 1, 0
          %v1141 = vsel %vm1109, 1, 0
          %v1142 = vsel %vm1110, 1, 0
          %v1143 = vsel %vm1111, 1, 0
          %v1144 = vsel %vm1112, 1, 0
          %v1145 = vsel %vm1113, 1, 0
          %v1146 = vcvt.s32.f32 %v1114
          %v1147 = vcvt.s32.f32 %v1115
          %v1148 = vcvt.s32.f32 %v1116
          %v1149 = vcvt.s32.f32 %v1117
          %v1150 = vcvt.s32.f32 %v1118
          %v1151 = vcvt.s32.f32 %v1119
          %v1152 = vcvt.s32.f32 %v1120
          %v1153 = vcvt.s32.f32 %v1121
          %v1154 = vcvt.s32.f32 %v1122
          %v1155 = vcvt.s32.f32 %v1123
          %v1156 = vcvt.s32.f32 %v1124
          %v1157 = vcvt.s32.f32 %v1125
          %v1158 = vcvt.s32.f32 %v1126
          %v1159 = vcvt.s32.f32 %v1127
          %v1160 = vcvt.s32.f32 %v1128
          %v1161 = vcvt.s32.f32 %v1129
          %v1162 = vcvt.s32.f32 %v1130
          %v1163 = vcvt.s32.f32 %v1131
          %v1164 = vcvt.s32.f32 %v1132
          %v1165 = vcvt.s32.f32 %v1133
          %v1166 = vcvt.s32.f32 %v1134
          %v1167 = vcvt.s32.f32 %v1135
          %v1168 = vcvt.s32.f32 %v1136
          %v1169 = vcvt.s32.f32 %v1137
          %v1170 = vcvt.s32.f32 %v1138
          %v1171 = vcvt.s32.f32 %v1139
          %v1172 = vcvt.s32.f32 %v1140
          %v1173 = vcvt.s32.f32 %v1141
          %v1174 = vcvt.s32.f32 %v1142
          %v1175 = vcvt.s32.f32 %v1143
          %v1176 = vcvt.s32.f32 %v1144
          %v1177 = vcvt.s32.f32 %v1145
          %v1178 = vadd.f32 %v1146, %v1148
          %v1179 = vadd.f32 %v1178, %v1150
          %v1180 = vadd.f32 %v1179, %v1152
          %v1181 = vadd.f32 %v1180, %v1154
          %v1182 = vadd.f32 %v1181, %v1156
          %v1183 = vadd.f32 %v1182, %v1158
          %v1184 = vadd.f32 %v1183, %v1160
          %v1185 = vadd.f32 %v1184, %v1162
          %v1186 = vadd.f32 %v1185, %v1164
          %v1187 = vadd.f32 %v1186, %v1166
          %v1188 = vadd.f32 %v1187, %v1168
          %v1189 = vadd.f32 %v1188, %v1170
          %v1190 = vadd.f32 %v1189, %v1172
          %v1191 = vadd.f32 %v1190, %v1174
          %v1192 = vadd.f32 %v1191, %v1176
          %v1193 = vrot.slane %v1192, 4
          %v1194 = vadd.f32 %v1192, %v1193
          %v1195 = vrot.slane %v1194, 2
          %v1196 = vadd.f32 %v1194, %v1195
          %v1197 = vrot.slane %v1196, 1
          %v1198 = vadd.f32 %v1196, %v1197
          %v1199 = vadd.f32 %v1147, %v1149
          %v1200 = vadd.f32 %v1199, %v1151
          %v1201 = vadd.f32 %v1200, %v1153
          %v1202 = vadd.f32 %v1201, %v1155
          %v1203 = vadd.f32 %v1202, %v1157
          %v1204 = vadd.f32 %v1203, %v1159
          %v1205 = vadd.f32 %v1204, %v1161
          %v1206 = vadd.f32 %v1205, %v1163
          %v1207 = vadd.f32 %v1206, %v1165
          %v1208 = vadd.f32 %v1207, %v1167
          %v1209 = vadd.f32 %v1208, %v1169
          %v1210 = vadd.f32 %v1209, %v1171
          %v1211 = vadd.f32 %v1210, %v1173
          %v1212 = vadd.f32 %v1211, %v1175
          %v1213 = vadd.f32 %v1212, %v1177
          %v1214 = vrot.slane %v1213, 4
          %v1215 = vadd.f32 %v1213, %v1214
          %v1216 = vrot.slane %v1215, 2
          %v1217 = vadd.f32 %v1215, %v1216
          %v1218 = vrot.slane %v1217, 1
          %v1219 = vadd.f32 %v1217, %v1218
          %vm1220 = vcmp.le.f32.partialorder %v774, 3.0
          %vm1221 = vcmp.le.f32.partialorder %v775, 3.0
          %vm1222 = vcmp.le.f32.partialorder %v776, 3.0
          %vm1223 = vcmp.le.f32.partialorder %v777, 3.0
          %vm1224 = vcmp.le.f32.partialorder %v778, 3.0
          %vm1225 = vcmp.le.f32.partialorder %v779, 3.0
          %vm1226 = vcmp.le.f32.partialorder %v780, 3.0
          %vm1227 = vcmp.le.f32.partialorder %v781, 3.0
          %vm1228 = vcmp.le.f32.partialorder %v782, 3.0
          %vm1229 = vcmp.le.f32.partialorder %v783, 3.0
          %vm1230 = vcmp.le.f32.partialorder %v784, 3.0
          %vm1231 = vcmp.le.f32.partialorder %v785, 3.0
          %vm1232 = vcmp.le.f32.partialorder %v786, 3.0
          %vm1233 = vcmp.le.f32.partialorder %v787, 3.0
          %vm1234 = vcmp.le.f32.partialorder %v788, 3.0
          %vm1235 = vcmp.le.f32.partialorder %v789, 3.0
          %vm1236 = vcmp.le.f32.partialorder %v790, 3.0
          %vm1237 = vcmp.le.f32.partialorder %v791, 3.0
          %vm1238 = vcmp.le.f32.partialorder %v792, 3.0
          %vm1239 = vcmp.le.f32.partialorder %v793, 3.0
          %vm1240 = vcmp.le.f32.partialorder %v794, 3.0
          %vm1241 = vcmp.le.f32.partialorder %v795, 3.0
          %vm1242 = vcmp.le.f32.partialorder %v796, 3.0
          %vm1243 = vcmp.le.f32.partialorder %v797, 3.0
          %vm1244 = vcmp.le.f32.partialorder %v798, 3.0
          %vm1245 = vcmp.le.f32.partialorder %v799, 3.0
          %vm1246 = vcmp.le.f32.partialorder %v800, 3.0
          %vm1247 = vcmp.le.f32.partialorder %v801, 3.0
          %vm1248 = vcmp.le.f32.partialorder %v802, 3.0
          %vm1249 = vcmp.le.f32.partialorder %v803, 3.0
          %vm1250 = vcmp.le.f32.partialorder %v804, 3.0
          %vm1251 = vcmp.le.f32.partialorder %v805, 3.0
          %v1252 = vsel %vm1220, 1, 0
          %v1253 = vsel %vm1221, 1, 0
          %v1254 = vsel %vm1222, 1, 0
          %v1255 = vsel %vm1223, 1, 0
          %v1256 = vsel %vm1224, 1, 0
          %v1257 = vsel %vm1225, 1, 0
          %v1258 = vsel %vm1226, 1, 0
          %v1259 = vsel %vm1227, 1, 0
          %v1260 = vsel %vm1228, 1, 0
          %v1261 = vsel %vm1229, 1, 0
          %v1262 = vsel %vm1230, 1, 0
          %v1263 = vsel %vm1231, 1, 0
          %v1264 = vsel %vm1232, 1, 0
          %v1265 = vsel %vm1233, 1, 0
          %v1266 = vsel %vm1234, 1, 0
          %v1267 = vsel %vm1235, 1, 0
          %v1268 = vsel %vm1236, 1, 0
          %v1269 = vsel %vm1237, 1, 0
          %v1270 = vsel %vm1238, 1, 0
          %v1271 = vsel %vm1239, 1, 0
          %v1272 = vsel %vm1240, 1, 0
          %v1273 = vsel %vm1241, 1, 0
          %v1274 = vsel %vm1242, 1, 0
          %v1275 = vsel %vm1243, 1, 0
          %v1276 = vsel %vm1244, 1, 0
          %v1277 = vsel %vm1245, 1, 0
          %v1278 = vsel %vm1246, 1, 0
          %v1279 = vsel %vm1247, 1, 0
          %v1280 = vsel %vm1248, 1, 0
          %v1281 = vsel %vm1249, 1, 0
          %v1282 = vsel %vm1250, 1, 0
          %v1283 = vsel %vm1251, 1, 0
          %v1284 = vcvt.s32.f32 %v1252
          %v1285 = vcvt.s32.f32 %v1253
          %v1286 = vcvt.s32.f32 %v1254
          %v1287 = vcvt.s32.f32 %v1255
          %v1288 = vcvt.s32.f32 %v1256
          %v1289 = vcvt.s32.f32 %v1257
          %v1290 = vcvt.s32.f32 %v1258
          %v1291 = vcvt.s32.f32 %v1259
          %v1292 = vcvt.s32.f32 %v1260
          %v1293 = vcvt.s32.f32 %v1261
          %v1294 = vcvt.s32.f32 %v1262
          %v1295 = vcvt.s32.f32 %v1263
          %v1296 = vcvt.s32.f32 %v1264
          %v1297 = vcvt.s32.f32 %v1265
          %v1298 = vcvt.s32.f32 %v1266
          %v1299 = vcvt.s32.f32 %v1267
          %v1300 = vcvt.s32.f32 %v1268
          %v1301 = vcvt.s32.f32 %v1269
          %v1302 = vcvt.s32.f32 %v1270
          %v1303 = vcvt.s32.f32 %v1271
          %v1304 = vcvt.s32.f32 %v1272
          %v1305 = vcvt.s32.f32 %v1273
          %v1306 = vcvt.s32.f32 %v1274
          %v1307 = vcvt.s32.f32 %v1275
          %v1308 = vcvt.s32.f32 %v1276
          %v1309 = vcvt.s32.f32 %v1277
          %v1310 = vcvt.s32.f32 %v1278
          %v1311 = vcvt.s32.f32 %v1279
          %v1312 = vcvt.s32.f32 %v1280
          %v1313 = vcvt.s32.f32 %v1281
          %v1314 = vcvt.s32.f32 %v1282
          %v1315 = vcvt.s32.f32 %v1283
          %v1316 = vadd.f32 %v1284, %v1286
          %v1317 = vadd.f32 %v1316, %v1288
          %v1318 = vadd.f32 %v1317, %v1290
          %v1319 = vadd.f32 %v1318, %v1292
          %v1320 = vadd.f32 %v1319, %v1294
          %v1321 = vadd.f32 %v1320, %v1296
          %v1322 = vadd.f32 %v1321, %v1298
          %v1323 = vadd.f32 %v1322, %v1300
          %v1324 = vadd.f32 %v1323, %v1302
          %v1325 = vadd.f32 %v1324, %v1304
          %v1326 = vadd.f32 %v1325, %v1306
          %v1327 = vadd.f32 %v1326, %v1308
          %v1328 = vadd.f32 %v1327, %v1310
          %v1329 = vadd.f32 %v1328, %v1312
          %v1330 = vadd.f32 %v1329, %v1314
          %v1331 = vrot.slane %v1330, 4
          %v1332 = vadd.f32 %v1330, %v1331
          %v1333 = vrot.slane %v1332, 2
          %v1334 = vadd.f32 %v1332, %v1333
          %v1335 = vrot.slane %v1334, 1
          %v1336 = vadd.f32 %v1334, %v1335
          %v1337 = vadd.f32 %v1285, %v1287
          %v1338 = vadd.f32 %v1337, %v1289
          %v1339 = vadd.f32 %v1338, %v1291
          %v1340 = vadd.f32 %v1339, %v1293
          %v1341 = vadd.f32 %v1340, %v1295
          %v1342 = vadd.f32 %v1341, %v1297
          %v1343 = vadd.f32 %v1342, %v1299
          %v1344 = vadd.f32 %v1343, %v1301
          %v1345 = vadd.f32 %v1344, %v1303
          %v1346 = vadd.f32 %v1345, %v1305
          %v1347 = vadd.f32 %v1346, %v1307
          %v1348 = vadd.f32 %v1347, %v1309
          %v1349 = vadd.f32 %v1348, %v1311
          %v1350 = vadd.f32 %v1349, %v1313
          %v1351 = vadd.f32 %v1350, %v1315
          %v1352 = vrot.slane %v1351, 4
          %v1353 = vadd.f32 %v1351, %v1352
          %v1354 = vrot.slane %v1353, 2
          %v1355 = vadd.f32 %v1353, %v1354
          %v1356 = vrot.slane %v1355, 1
          %v1357 = vadd.f32 %v1355, %v1356
          %vm1358 = vcmp.le.f32.partialorder %v774, 4.0
          %vm1359 = vcmp.le.f32.partialorder %v775, 4.0
          %vm1360 = vcmp.le.f32.partialorder %v776, 4.0
          %vm1361 = vcmp.le.f32.partialorder %v777, 4.0
          %vm1362 = vcmp.le.f32.partialorder %v778, 4.0
          %vm1363 = vcmp.le.f32.partialorder %v779, 4.0
          %vm1364 = vcmp.le.f32.partialorder %v780, 4.0
          %vm1365 = vcmp.le.f32.partialorder %v781, 4.0
          %vm1366 = vcmp.le.f32.partialorder %v782, 4.0
          %vm1367 = vcmp.le.f32.partialorder %v783, 4.0
          %vm1368 = vcmp.le.f32.partialorder %v784, 4.0
          %vm1369 = vcmp.le.f32.partialorder %v785, 4.0
          %vm1370 = vcmp.le.f32.partialorder %v786, 4.0
          %vm1371 = vcmp.le.f32.partialorder %v787, 4.0
          %vm1372 = vcmp.le.f32.partialorder %v788, 4.0
          %vm1373 = vcmp.le.f32.partialorder %v789, 4.0
          %vm1374 = vcmp.le.f32.partialorder %v790, 4.0
          %vm1375 = vcmp.le.f32.partialorder %v791, 4.0
          %vm1376 = vcmp.le.f32.partialorder %v792, 4.0
          %vm1377 = vcmp.le.f32.partialorder %v793, 4.0
          %vm1378 = vcmp.le.f32.partialorder %v794, 4.0
          %vm1379 = vcmp.le.f32.partialorder %v795, 4.0
          %vm1380 = vcmp.le.f32.partialorder %v796, 4.0
          %vm1381 = vcmp.le.f32.partialorder %v797, 4.0
          %vm1382 = vcmp.le.f32.partialorder %v798, 4.0
          %vm1383 = vcmp.le.f32.partialorder %v799, 4.0
          %vm1384 = vcmp.le.f32.partialorder %v800, 4.0
          %vm1385 = vcmp.le.f32.partialorder %v801, 4.0
          %vm1386 = vcmp.le.f32.partialorder %v802, 4.0
          %vm1387 = vcmp.le.f32.partialorder %v803, 4.0
          %vm1388 = vcmp.le.f32.partialorder %v804, 4.0
          %vm1389 = vcmp.le.f32.partialorder %v805, 4.0
          %v1390 = vsel %vm1358, 1, 0
          %v1391 = vsel %vm1359, 1, 0
          %v1392 = vsel %vm1360, 1, 0
          %v1393 = vsel %vm1361, 1, 0
          %v1394 = vsel %vm1362, 1, 0
          %v1395 = vsel %vm1363, 1, 0
          %v1396 = vsel %vm1364, 1, 0
          %v1397 = vsel %vm1365, 1, 0
          %v1398 = vsel %vm1366, 1, 0
          %v1399 = vsel %vm1367, 1, 0
          %v1400 = vsel %vm1368, 1, 0
          %v1401 = vsel %vm1369, 1, 0
          %v1402 = vsel %vm1370, 1, 0
          %v1403 = vsel %vm1371, 1, 0
          %v1404 = vsel %vm1372, 1, 0
          %v1405 = vsel %vm1373, 1, 0
          %v1406 = vsel %vm1374, 1, 0
          %v1407 = vsel %vm1375, 1, 0
          %v1408 = vsel %vm1376, 1, 0
          %v1409 = vsel %vm1377, 1, 0
          %v1410 = vsel %vm1378, 1, 0
          %v1411 = vsel %vm1379, 1, 0
          %v1412 = vsel %vm1380, 1, 0
          %v1413 = vsel %vm1381, 1, 0
          %v1414 = vsel %vm1382, 1, 0
          %v1415 = vsel %vm1383, 1, 0
          %v1416 = vsel %vm1384, 1, 0
          %v1417 = vsel %vm1385, 1, 0
          %v1418 = vsel %vm1386, 1, 0
          %v1419 = vsel %vm1387, 1, 0
          %v1420 = vsel %vm1388, 1, 0
          %v1421 = vsel %vm1389, 1, 0
          %v1422 = vcvt.s32.f32 %v1390
          %v1423 = vcvt.s32.f32 %v1391
          %v1424 = vcvt.s32.f32 %v1392
          %v1425 = vcvt.s32.f32 %v1393
          %v1426 = vcvt.s32.f32 %v1394
          %v1427 = vcvt.s32.f32 %v1395
          %v1428 = vcvt.s32.f32 %v1396
          %v1429 = vcvt.s32.f32 %v1397
          %v1430 = vcvt.s32.f32 %v1398
          %v1431 = vcvt.s32.f32 %v1399
          %v1432 = vcvt.s32.f32 %v1400
          %v1433 = vcvt.s32.f32 %v1401
          %v1434 = vcvt.s32.f32 %v1402
          %v1435 = vcvt.s32.f32 %v1403
          %v1436 = vcvt.s32.f32 %v1404
          %v1437 = vcvt.s32.f32 %v1405
          %v1438 = vcvt.s32.f32 %v1406
          %v1439 = vcvt.s32.f32 %v1407
          %v1440 = vcvt.s32.f32 %v1408
          %v1441 = vcvt.s32.f32 %v1409
          %v1442 = vcvt.s32.f32 %v1410
          %v1443 = vcvt.s32.f32 %v1411
          %v1444 = vcvt.s32.f32 %v1412
          %v1445 = vcvt.s32.f32 %v1413
          %v1446 = vcvt.s32.f32 %v1414
          %v1447 = vcvt.s32.f32 %v1415
          %v1448 = vcvt.s32.f32 %v1416
          %v1449 = vcvt.s32.f32 %v1417
          %v1450 = vcvt.s32.f32 %v1418
          %v1451 = vcvt.s32.f32 %v1419
          %v1452 = vcvt.s32.f32 %v1420
          %v1453 = vcvt.s32.f32 %v1421
          %v1454 = vadd.f32 %v1422, %v1424
          %v1455 = vadd.f32 %v1454, %v1426
          %v1456 = vadd.f32 %v1455, %v1428
          %v1457 = vadd.f32 %v1456, %v1430
          %v1458 = vadd.f32 %v1457, %v1432
          %v1459 = vadd.f32 %v1458, %v1434
          %v1460 = vadd.f32 %v1459, %v1436
          %v1461 = vadd.f32 %v1460, %v1438
          %v1462 = vadd.f32 %v1461, %v1440
          %v1463 = vadd.f32 %v1462, %v1442
          %v1464 = vadd.f32 %v1463, %v1444
          %v1465 = vadd.f32 %v1464, %v1446
          %v1466 = vadd.f32 %v1465, %v1448
          %v1467 = vadd.f32 %v1466, %v1450
          %v1468 = vadd.f32 %v1467, %v1452
          %v1469 = vrot.slane %v1468, 4
          %v1470 = vadd.f32 %v1468, %v1469
          %v1471 = vrot.slane %v1470, 2
          %v1472 = vadd.f32 %v1470, %v1471
          %v1473 = vrot.slane %v1472, 1
          %v1474 = vadd.f32 %v1472, %v1473
          %v1475 = vadd.f32 %v1423, %v1425
          %v1476 = vadd.f32 %v1475, %v1427
          %v1477 = vadd.f32 %v1476, %v1429
          %v1478 = vadd.f32 %v1477, %v1431
          %v1479 = vadd.f32 %v1478, %v1433
          %v1480 = vadd.f32 %v1479, %v1435
          %v1481 = vadd.f32 %v1480, %v1437
          %v1482 = vadd.f32 %v1481, %v1439
          %v1483 = vadd.f32 %v1482, %v1441
          %v1484 = vadd.f32 %v1483, %v1443
          %v1485 = vadd.f32 %v1484, %v1445
          %v1486 = vadd.f32 %v1485, %v1447
          %v1487 = vadd.f32 %v1486, %v1449
          %v1488 = vadd.f32 %v1487, %v1451
          %v1489 = vadd.f32 %v1488, %v1453
          %v1490 = vrot.slane %v1489, 4
          %v1491 = vadd.f32 %v1489, %v1490
          %v1492 = vrot.slane %v1491, 2
          %v1493 = vadd.f32 %v1491, %v1492
          %v1494 = vrot.slane %v1493, 1
          %v1495 = vadd.f32 %v1493, %v1494
          %vm1496 = vcmp.le.f32.partialorder %v774, 5.0
          %vm1497 = vcmp.le.f32.partialorder %v775, 5.0
          %vm1498 = vcmp.le.f32.partialorder %v776, 5.0
          %vm1499 = vcmp.le.f32.partialorder %v777, 5.0
          %vm1500 = vcmp.le.f32.partialorder %v778, 5.0
          %vm1501 = vcmp.le.f32.partialorder %v779, 5.0
          %vm1502 = vcmp.le.f32.partialorder %v780, 5.0
          %vm1503 = vcmp.le.f32.partialorder %v781, 5.0
          %vm1504 = vcmp.le.f32.partialorder %v782, 5.0
          %vm1505 = vcmp.le.f32.partialorder %v783, 5.0
          %vm1506 = vcmp.le.f32.partialorder %v784, 5.0
          %vm1507 = vcmp.le.f32.partialorder %v785, 5.0
          %vm1508 = vcmp.le.f32.partialorder %v786, 5.0
          %vm1509 = vcmp.le.f32.partialorder %v787, 5.0
          %vm1510 = vcmp.le.f32.partialorder %v788, 5.0
          %vm1511 = vcmp.le.f32.partialorder %v789, 5.0
          %vm1512 = vcmp.le.f32.partialorder %v790, 5.0
          %vm1513 = vcmp.le.f32.partialorder %v791, 5.0
          %vm1514 = vcmp.le.f32.partialorder %v792, 5.0
          %vm1515 = vcmp.le.f32.partialorder %v793, 5.0
          %vm1516 = vcmp.le.f32.partialorder %v794, 5.0
          %vm1517 = vcmp.le.f32.partialorder %v795, 5.0
          %vm1518 = vcmp.le.f32.partialorder %v796, 5.0
          %vm1519 = vcmp.le.f32.partialorder %v797, 5.0
          %vm1520 = vcmp.le.f32.partialorder %v798, 5.0
          %vm1521 = vcmp.le.f32.partialorder %v799, 5.0
          %vm1522 = vcmp.le.f32.partialorder %v800, 5.0
          %vm1523 = vcmp.le.f32.partialorder %v801, 5.0
          %vm1524 = vcmp.le.f32.partialorder %v802, 5.0
          %vm1525 = vcmp.le.f32.partialorder %v803, 5.0
          %vm1526 = vcmp.le.f32.partialorder %v804, 5.0
          %vm1527 = vcmp.le.f32.partialorder %v805, 5.0
          %v1528 = vsel %vm1496, 1, 0
          %v1529 = vsel %vm1497, 1, 0
          %v1530 = vsel %vm1498, 1, 0
          %v1531 = vsel %vm1499, 1, 0
          %v1532 = vsel %vm1500, 1, 0
          %v1533 = vsel %vm1501, 1, 0
          %v1534 = vsel %vm1502, 1, 0
          %v1535 = vsel %vm1503, 1, 0
          %v1536 = vsel %vm1504, 1, 0
          %v1537 = vsel %vm1505, 1, 0
          %v1538 = vsel %vm1506, 1, 0
          %v1539 = vsel %vm1507, 1, 0
          %v1540 = vsel %vm1508, 1, 0
          %v1541 = vsel %vm1509, 1, 0
          %v1542 = vsel %vm1510, 1, 0
          %v1543 = vsel %vm1511, 1, 0
          %v1544 = vsel %vm1512, 1, 0
          %v1545 = vsel %vm1513, 1, 0
          %v1546 = vsel %vm1514, 1, 0
          %v1547 = vsel %vm1515, 1, 0
          %v1548 = vsel %vm1516, 1, 0
          %v1549 = vsel %vm1517, 1, 0
          %v1550 = vsel %vm1518, 1, 0
          %v1551 = vsel %vm1519, 1, 0
          %v1552 = vsel %vm1520, 1, 0
          %v1553 = vsel %vm1521, 1, 0
          %v1554 = vsel %vm1522, 1, 0
          %v1555 = vsel %vm1523, 1, 0
          %v1556 = vsel %vm1524, 1, 0
          %v1557 = vsel %vm1525, 1, 0
          %v1558 = vsel %vm1526, 1, 0
          %v1559 = vsel %vm1527, 1, 0
          %v1560 = vcvt.s32.f32 %v1528
          %v1561 = vcvt.s32.f32 %v1529
          %v1562 = vcvt.s32.f32 %v1530
          %v1563 = vcvt.s32.f32 %v1531
          %v1564 = vcvt.s32.f32 %v1532
          %v1565 = vcvt.s32.f32 %v1533
          %v1566 = vcvt.s32.f32 %v1534
          %v1567 = vcvt.s32.f32 %v1535
          %v1568 = vcvt.s32.f32 %v1536
          %v1569 = vcvt.s32.f32 %v1537
          %v1570 = vcvt.s32.f32 %v1538
          %v1571 = vcvt.s32.f32 %v1539
          %v1572 = vcvt.s32.f32 %v1540
          %v1573 = vcvt.s32.f32 %v1541
          %v1574 = vcvt.s32.f32 %v1542
          %v1575 = vcvt.s32.f32 %v1543
          %v1576 = vcvt.s32.f32 %v1544
          %v1577 = vcvt.s32.f32 %v1545
          %v1578 = vcvt.s32.f32 %v1546
          %v1579 = vcvt.s32.f32 %v1547
          %v1580 = vcvt.s32.f32 %v1548
          %v1581 = vcvt.s32.f32 %v1549
          %v1582 = vcvt.s32.f32 %v1550
          %v1583 = vcvt.s32.f32 %v1551
          %v1584 = vcvt.s32.f32 %v1552
          %v1585 = vcvt.s32.f32 %v1553
          %v1586 = vcvt.s32.f32 %v1554
          %v1587 = vcvt.s32.f32 %v1555
          %v1588 = vcvt.s32.f32 %v1556
          %v1589 = vcvt.s32.f32 %v1557
          %v1590 = vcvt.s32.f32 %v1558
          %v1591 = vcvt.s32.f32 %v1559
          %v1592 = vadd.f32 %v1560, %v1562
          %v1593 = vadd.f32 %v1592, %v1564
          %v1594 = vadd.f32 %v1593, %v1566
          %v1595 = vadd.f32 %v1594, %v1568
          %v1596 = vadd.f32 %v1595, %v1570
          %v1597 = vadd.f32 %v1596, %v1572
          %v1598 = vadd.f32 %v1597, %v1574
          %v1599 = vadd.f32 %v1598, %v1576
          %v1600 = vadd.f32 %v1599, %v1578
          %v1601 = vadd.f32 %v1600, %v1580
          %v1602 = vadd.f32 %v1601, %v1582
          %v1603 = vadd.f32 %v1602, %v1584
          %v1604 = vadd.f32 %v1603, %v1586
          %v1605 = vadd.f32 %v1604, %v1588
          %v1606 = vadd.f32 %v1605, %v1590
          %v1607 = vrot.slane %v1606, 4
          %v1608 = vadd.f32 %v1606, %v1607
          %v1609 = vrot.slane %v1608, 2
          %v1610 = vadd.f32 %v1608, %v1609
          %v1611 = vrot.slane %v1610, 1
          %v1612 = vadd.f32 %v1610, %v1611
          %v1613 = vadd.f32 %v1561, %v1563
          %v1614 = vadd.f32 %v1613, %v1565
          %v1615 = vadd.f32 %v1614, %v1567
          %v1616 = vadd.f32 %v1615, %v1569
          %v1617 = vadd.f32 %v1616, %v1571
          %v1618 = vadd.f32 %v1617, %v1573
          %v1619 = vadd.f32 %v1618, %v1575
          %v1620 = vadd.f32 %v1619, %v1577
          %v1621 = vadd.f32 %v1620, %v1579
          %v1622 = vadd.f32 %v1621, %v1581
          %v1623 = vadd.f32 %v1622, %v1583
          %v1624 = vadd.f32 %v1623, %v1585
          %v1625 = vadd.f32 %v1624, %v1587
          %v1626 = vadd.f32 %v1625, %v1589
          %v1627 = vadd.f32 %v1626, %v1591
          %v1628 = vrot.slane %v1627, 4
          %v1629 = vadd.f32 %v1627, %v1628
          %v1630 = vrot.slane %v1629, 2
          %v1631 = vadd.f32 %v1629, %v1630
          %v1632 = vrot.slane %v1631, 1
          %v1633 = vadd.f32 %v1631, %v1632
          %v1634 = vld [vmem:[#allocation4] sm:$0xff]
          %v1635 = vld [vmem:[#allocation4 + $0x8] sm:$0xff]
          %vm1636 = vcmask 1040384
          %v1637 = vsel %vm1636, %v922, %v1060
          %v1638 = vsel %vm1636, %v943, %v1081
          %vm1639 = vcmask 1041408
          %v1640 = vsel %vm1639, %v1637, %v1198
          %v1641 = vsel %vm1639, %v1638, %v1219
          %vm1642 = vcmask 1042432
          %v1643 = vsel %vm1642, %v1640, %v1336
          %v1644 = vsel %vm1642, %v1641, %v1357
          %vm1645 = vcmask 1043456
          %v1646 = vsel %vm1645, %v1643, %v1474
          %v1647 = vsel %vm1645, %v1644, %v1495
          %vm1648 = vcmask 1044480
          %v1649 = vsel %vm1648, %v1646, %v1612
          %v1650 = vsel %vm1648, %v1647, %v1633
          %vm1651 = vcmask 1045504
          %v1652 = vsel %vm1651, %v1649, 0.0
          %v1653 = vsel %vm1651, %v1650, 0.0
          %vm1654 = vcmask 1046528
          %v1655 = vsel %vm1654, %v1652, 0.0
          %v1656 = vsel %vm1654, %v1653, 0.0
          %v1657 = vadd.f32 %v1634, %v1655
          %v1658 = vadd.f32 %v1635, %v1656
          %1659 = vst [vmem:[#allocation4] sm:$0xff] %v1657
          %1660 = vst [vmem:[#allocation4 + $0x8] sm:$0xff] %v1658
          %v1663 = vcombine.high %v770, %v772
          %v1665 = vunpack.c.l.s4 1966171168
          %v1666 = vunpack.c.0.s8 %v1665
          %v1667 = vlaneseq
          %v1668 = vshrl.u32 %v1667, 7
          %v1669 = vsub.s32 %v1666, %v1668
          %v1670 = vrot.slane %v1663, %v1669
          %v1671 = vcombine.high %v1670, %v1670
          %v1673 = vunpack.c.l.s4 1966171168
          %v1674 = vunpack.c.0.s8 %v1673
          %v1675 = vlaneseq
          %v1676 = vshrl.u32 %v1675, 7
          %v1677 = vsub.s32 %v1674, %v1676
          %v1678 = vrot.slane %v1671, %v1677
          %v1679 = vcombine.high %v1678, %v1678
          %v1681 = vlaneseq
          %vm1682 = vcmp.ge.s32.totalorder %v1681, 0
          %vm1683 = vcmp.lt.s32.totalorder %v1681, 256
          %vm1684 = vmand %vm1682, %vm1683
          %1685 = vst.msk [vmem:[#allocation3] sm:$0x3] %vm1684, %v1679
          %vm1686 = vcmask 1047559
          %v1687 = vsel %vm1686, %v770, inf
          %v1688 = vsel %vm1686, %v772, inf
          %v1689 = vmin.f32 %v1687, %v1688
          %1690 = vmin.xlane.f32.xlu0 %v1689
          %v1691 = vpop.xlane.xlu0 %1690
          %vm1692 = vcmask 7175
          %1693 = vst.msk [vmem:[#allocation5 - $0x7] sm:$0x80] %vm1692, %v1691
        $region36: #{tpu_custom_call.1} parent=27 // pred_fallthru
          _
        %p1694 = scmp.eq.s32.totalorder %s28, 2
        // Predicated region
        $region37: #{tpu_custom_call.1} parent=27 // pred_check
          %p1695 = pneg %p1694
        $region38: #{tpu_custom_call.1} parent=27 // pred_check_branch
          %1697 = sbr.rel (%p1695) target = $region40
        $region39: #{tpu_custom_call.1} parent=27 // pred_region
          %v1698 = vld [vmem:[#allocation3] sm:$0x3]
          %v1699 = vmin.f32 %v1698, 6.0
          %v1700 = vcvt.f32.s32.to.zero.pseudo %v1699
          %v1701 = vld [vmem:[#allocation4] sm:$0xff]
          %v1702 = vld [vmem:[#allocation4 + $0x8] sm:$0xff]
          %v1703 = vlaneseq
          %v1704 = vshrl.u32 %v1703, 7
          %v1705 = vlaneseq
          %v1706 = vshrl.u32 %v1705, 7
          %v1707 = vsub.s32 0, %v1706
          %v1708 = vrot.slane %v1700, %v1707
          %v1709 = vlaneseq
          %v1710 = vshrl.u32 %v1709, 7
          %v1711 = vsub.s32 1, %v1710
          %v1712 = vrot.slane %v1700, %v1711
          %vm1713 = vcmp.lt.s32.totalorder %v1704, %v1708
          %vm1714 = vcmp.lt.s32.totalorder %v1704, %v1712
          %v1715 = vlaneseq
          %v1716 = vshrl.u32 %v1715, 7
          %v1717 = vsub.s32 0, %v1716
          %v1718 = vrot.slane %v1701, %v1717
          %v1719 = vlaneseq
          %v1720 = vshrl.u32 %v1719, 7
          %v1721 = vsub.s32 0, %v1720
          %v1722 = vrot.slane %v1702, %v1721
          %v1723 = vsel %vm1713, %v1701, %v1718
          %v1724 = vsel %vm1714, %v1702, %v1722
          %vm1725 = vcmp.gt.f32.partialorder %v1698, 0.0
          %v1726 = vsel %vm1725, 1, 0
          %v1727 = vlaneseq
          %v1728 = vshrl.u32 %v1727, 7
          %v1729 = vsub.s32 0, %v1728
          %v1730 = vrot.slane %v1726, %v1729
          %v1731 = vlaneseq
          %v1732 = vshrl.u32 %v1731, 7
          %v1733 = vsub.s32 1, %v1732
          %v1734 = vrot.slane %v1726, %v1733
          %vm1735 = vcmp.eq.s32.totalorder %v1730, 1
          %vm1736 = vcmp.eq.s32.totalorder %v1734, 1
          %v1737 = vsel %vm1735, %v1723, 0.0
          %v1738 = vsel %vm1736, %v1724, 0.0
          %v1739 = vcvt.f32.s32.to.zero.pseudo %v1737
          %v1740 = vcvt.f32.s32.to.zero.pseudo %v1738
          %1741 = vst [vmem:[%s225] sm:$0xff] %v1739
          %1742 = vst [vmem:[%s225 + $0x8] sm:$0xff] %v1740
          %v1743 = vlaneseq
          %vm1744 = vcmp.ge.s32.totalorder %v1743, 0
          %vm1745 = vcmp.lt.s32.totalorder %v1743, 256
          %vm1746 = vmand %vm1744, %vm1745
          %1747 = vst.msk [vmem:[%s232] sm:$0x3] %vm1746, %v1700
        $region40: #{tpu_custom_call.1} parent=27 // pred_fallthru
          _
        %s1748 = sand.u32 %s106, 1
        %s1749 = scalar_lea.sflag [#allocation7], %s1748
        %s1750 = sand.u32 %s106, 1
        %s1751 = smul.addr %s1750, 16
        %s1752 = scalar_lea.vmem [#allocation6], %s1751
        %s1753 = sand.u32 %s134, 1
        %s1754 = scalar_lea.sflag [#allocation9], %s1753
        %s1755 = sand.u32 %s134, 1
        %s1756 = smul.addr %s1755, 2
        %s1757 = scalar_lea.vmem [#allocation8], %s1756
        // Predicated region
        $region41: #{tpu_custom_call.1} parent=27 // pred_check
          %p1758 = pneg %p116
        $region42: #{tpu_custom_call.1} parent=27 // pred_check_branch
          %1760 = sbr.rel (%p1758) target = $region44
        $region43: #{tpu_custom_call.1} parent=27 // pred_region
          %s1761 = smul.u32 2, %s27
          %s1763 = ssub.s32 256, 256
          %1764 = vsyncadd %s1749, %s1763
          %s1765 = smul.addr %s26, 2
          %s1766 = sadd.s32 %s1761, %s1765
          %s1767 = smul.addr %s1766, 128
          %s1768 = scalar_lea.hbm %s2, %s1767
          %s1770 = sshll.u32 %s1752, 4
          %s1771 = int_to_ptr.vmem [resolvable:$true] %s1770
          %1773 = dma.vmem_to_hbm [thread:$0]  %s1771, 256, %s1768, %s1749
        $region44: #{tpu_custom_call.1} parent=27 // pred_fallthru
          _
        // Predicated region
        $region45: #{tpu_custom_call.1} parent=27 // pred_check
          %p1774 = pneg %p144
        $region46: #{tpu_custom_call.1} parent=27 // pred_check_branch
          %1776 = sbr.rel (%p1774) target = $region48
        $region47: #{tpu_custom_call.1} parent=27 // pred_region
          %s1777 = smul.u32 2, %s27
          %s1779 = ssub.s32 32, 32
          %1780 = vsyncadd %s1754, %s1779
          %s1781 = smul.addr %s26, 2
          %s1782 = sadd.s32 %s1777, %s1781
          %s1783 = smul.addr %s1782, 16
          %s1784 = scalar_lea.hbm %s3, %s1783
          %s1786 = sshll.u32 %s1757, 4
          %s1787 = int_to_ptr.vmem [resolvable:$true] %s1786
          %1789 = dma.vmem_to_hbm [thread:$0]  %s1787, 32, %s1784, %s1754
        $region48: #{tpu_custom_call.1} parent=27 // pred_fallthru
          _
      $region28: #{tpu_custom_call.1} parent=5 // pred_fallthru
        _
      %p1790 = scmp.le.s32.totalorder 2, %s16
      // Predicated region
      $region49: #{tpu_custom_call.1} parent=5 // pred_check
        %p1791 = pneg %p1790
      $region50: #{tpu_custom_call.1} parent=5 // pred_check_branch
        %1793 = sbr.rel (%p1791) target = $region52
      $region51: #{tpu_custom_call.1} parent=5 // pred_region
        %s1794 = ssub.s32 %s16, 2
        // Predicated region
        $region53: #{tpu_custom_call.1} parent=51 // pred_check
          %p1795 = pneg %p122
        $region54: #{tpu_custom_call.1} parent=51 // pred_check_branch
          %1797 = sbr.rel (%p1795) target = $region56
        $region55: #{tpu_custom_call.1} parent=51 // pred_region
          %s1798 = sand.u32 %s107, 1
          %s1799 = scalar_lea.sflag [#allocation7], %s1798
          %s1800 = sand.u32 %s107, 1
          %s1801 = smul.addr %s1800, 16
          %s1802 = scalar_lea.vmem [#allocation6], %s1801
          %1803 = dma.done %s1799, 256
        $region56: #{tpu_custom_call.1} parent=51 // pred_fallthru
          _
        // Predicated region
        $region57: #{tpu_custom_call.1} parent=51 // pred_check
          %p1804 = pneg %p150
        $region58: #{tpu_custom_call.1} parent=51 // pred_check_branch
          %1806 = sbr.rel (%p1804) target = $region60
        $region59: #{tpu_custom_call.1} parent=51 // pred_region
          %s1807 = sand.u32 %s135, 1
          %s1808 = scalar_lea.sflag [#allocation9], %s1807
          %s1809 = sand.u32 %s135, 1
          %s1810 = smul.addr %s1809, 2
          %s1811 = scalar_lea.vmem [#allocation8], %s1810
          %1812 = dma.done %s1808, 32
        $region60: #{tpu_custom_call.1} parent=51 // pred_fallthru
          _
      $region52: #{tpu_custom_call.1} parent=5 // pred_fallthru
        _
    $region6: #{tpu_custom_call.1} parent=1 // loop_footer
      %s20 = sadd.s32 1, %s16
    $region7: #{tpu_custom_call.1} parent=1 // loop_footer_branch
      %15 = sbr.rel target = $region3
    $region8: #{tpu_custom_call.1} parent=1 // loop_exit
      _
    %1813 = vsyncpa [#allocation7], 1
    %s1814 = scalar_lea.sflag [#allocation7], 1
    %1815 = vsyncpa %s1814, 1
    %1816 = vsyncpa [#allocation9], 1
    %s1817 = scalar_lea.sflag [#allocation9], 1
    %1818 = vsyncpa %s1817, 1

</llo_original>
